<compile_context>
chip_gen: v7x
topology: tpu7x:2x2x1
jax: 0.10.0
libtpu: 0.0.40
codegen_flags: <defaults>
</compile_context>

<pallas_src>
import jax
import jax.numpy as jnp
from jax.experimental import pallas as pl
from jax.experimental.pallas import tpu as pltpu

# ----------------------------- configuration ------------------------------
T = 8            # seq_len
B = 2            # batch
E = 32           # encoder_embed_dim
QKV = 32         # qkv_dim
H = 4            # encoder_attention_heads
HD = QKV // H    # head dim
FFN = 64         # encoder_ffn_embed_dim
LN_EPS = 1e-5

N = T * B        # tokens in the folded slab (t-major, b-minor: row n = t*B + b)
EP = 40          # padded qkv contraction dim: E + 1 (bias row) rounded up to a multiple of 8

NEG = -1e9

# head-major weight slab layout: (H, EP + HD, 128)
#   rows [0:E)      lanes [0:3*HD)  -> [Wq | Wk | Wv] for this head (q part pre-scaled)
#   row   E         lanes [0:3*HD)  -> [bq | bk | bv] for this head (x_aug lane E == 1)
#   rows [EP:EP+HD) lanes [0:E)     -> Wo rows for this head
HEAD_ROWS = EP + HD

# flat slab layout: (FLAT_ROWS, 128)
R_W1 = 0                 # rows [0:E)        lanes [0:FFN) -> w1
R_W2 = E                 # rows [E:E+FFN)    lanes [0:E)   -> w2
R_BO = E + FFN           # single rows below: lanes [0:E) or [0:FFN)
R_LN1G = R_BO + 1
R_LN1B = R_BO + 2
R_B1 = R_BO + 3
R_B2 = R_BO + 4
R_LN2G = R_BO + 5
R_LN2B = R_BO + 6
FLAT_ROWS = 104          # 96 weight rows + 8-row (one sublane group) bias/LN block


# ------------------------------ Pallas kernel ------------------------------
def _encoder_layer_kernel(xin_ref, hslab_ref, fslab_ref, out_ref):
    # per-call activation slab: rows [0:N) = x_aug (x | 1 | 0-pad), rows [N:2N) = attn bias
    x_aug = xin_ref[0:N, :]                       # (N, EP) f32
    x = x_aug[:, 0:E]                             # (N, E)  residual stream
    attn_bias = xin_ref[N:2 * N, 0:N]             # (N, N)  additive mask (0 / -1e9)

    # ---- fused per-head QKV projection (q-scale and q/k/v biases folded into the slab) ----
    wqkv = hslab_ref[:, 0:EP, 0:3 * HD]           # (H, EP, 3*HD)
    xb = jnp.broadcast_to(x_aug[None, :, :], (H, N, EP))
    qkv = jax.lax.dot_general(xb, wqkv, (((2,), (1,)), ((0,), (0,))),
                              preferred_element_type=jnp.float32)     # (H, N, 3*HD)
    q = qkv[:, :, 0:HD]
    k = qkv[:, :, HD:2 * HD]
    v = qkv[:, :, 2 * HD:3 * HD]

    # ---- attention: one batched score matmul / softmax / PV matmul over all heads ----
    s = jax.lax.dot_general(q, k, (((2,), (2,)), ((0,), (0,))),
                            preferred_element_type=jnp.float32)       # (H, N, N)
    s = s + attn_bias                                                  # broadcast over heads
    s = s - jnp.max(s, axis=-1, keepdims=True)
    p = jnp.exp(s)
    inv = 1.0 / jnp.sum(p, axis=-1, keepdims=True)   # exact reciprocal on (H, N, 1) only
    p = p * inv
    o = jax.lax.dot_general(p, v, (((2,), (1,)), ((0,), (0,))),
                            preferred_element_type=jnp.float32)       # (H, N, HD)

    # ---- output projection: per-head matmul, then sum over heads (tile-aligned adds) ----
    wo = hslab_ref[:, EP:EP + HD, 0:E]            # (H, HD, E)
    y_h = jax.lax.dot_general(o, wo, (((2,), (1,)), ((0,), (0,))),
                              preferred_element_type=jnp.float32)     # (H, N, E)
    b_o = fslab_ref[R_BO:R_BO + 1, 0:E]
    y = jnp.sum(y_h, axis=0) + b_o                # (N, E)

    # ---- residual + LayerNorm 1 (post-norm) ----
    ln1_g = fslab_ref[R_LN1G:R_LN1G + 1, 0:E]
    ln1_b = fslab_ref[R_LN1B:R_LN1B + 1, 0:E]
    z = x + y
    mu = jnp.mean(z, axis=-1, keepdims=True)
    var = jnp.mean((z - mu) ** 2, axis=-1, keepdims=True)
    z = (z - mu) * jax.lax.rsqrt(var + LN_EPS) * ln1_g + ln1_b

    # ---- FFN: fc1 -> relu -> fc2 ----
    w1 = fslab_ref[R_W1:R_W1 + E, 0:FFN]          # (E, FFN)
    w2 = fslab_ref[R_W2:R_W2 + FFN, 0:E]          # (FFN, E)
    b1 = fslab_ref[R_B1:R_B1 + 1, 0:FFN]
    b2 = fslab_ref[R_B2:R_B2 + 1, 0:E]
    h1 = jnp.maximum(
        jnp.dot(z, w1, preferred_element_type=jnp.float32) + b1, 0.0)
    h2 = jnp.dot(h1, w2, preferred_element_type=jnp.float32) + b2

    # ---- residual + LayerNorm 2 ----
    ln2_g = fslab_ref[R_LN2G:R_LN2G + 1, 0:E]
    ln2_b = fslab_ref[R_LN2B:R_LN2B + 1, 0:E]
    z2 = z + h2
    mu2 = jnp.mean(z2, axis=-1, keepdims=True)
    var2 = jnp.mean((z2 - mu2) ** 2, axis=-1, keepdims=True)
    out_ref[...] = (z2 - mu2) * jax.lax.rsqrt(var2 + LN_EPS) * ln2_g + ln2_b


# --------------------------- parameter packing -----------------------------
def pack_params(p):
    """Head-major, bias-augmented, scale-folded weight packing into two tile-aligned slabs."""
    f32 = jnp.float32
    scale = float(HD) ** -0.5
    wq = p["wq"].astype(f32) * scale              # (xW + b) * s == x(Ws) + (bs)
    bq = p["bq"].astype(f32) * scale
    wk, bk = p["wk"].astype(f32), p["bk"].astype(f32)
    wv, bv = p["wv"].astype(f32), p["bv"].astype(f32)
    wo = p["wo"].astype(f32)

    head_slab = jnp.zeros((H, HEAD_ROWS, 128), f32)
    for h in range(H):
        c = slice(h * HD, (h + 1) * HD)
        w_h = jnp.concatenate([wq[:, c], wk[:, c], wv[:, c]], axis=1)     # (E, 3*HD)
        b_h = jnp.concatenate([bq[:, c], bk[:, c], bv[:, c]], axis=1)[0]  # (3*HD,)
        head_slab = head_slab.at[h, 0:E, 0:3 * HD].set(w_h)
        head_slab = head_slab.at[h, E, 0:3 * HD].set(b_h)       # bias row (x_aug lane E == 1)
        head_slab = head_slab.at[h, EP:EP + HD, 0:E].set(wo[c, :])

    flat_slab = jnp.zeros((FLAT_ROWS, 128), f32)
    flat_slab = flat_slab.at[R_W1:R_W1 + E, 0:FFN].set(p["w1"].astype(f32))
    flat_slab = flat_slab.at[R_W2:R_W2 + FFN, 0:E].set(p["w2"].astype(f32))
    flat_slab = flat_slab.at[R_BO, 0:E].set(p["bo"].astype(f32)[0])
    flat_slab = flat_slab.at[R_LN1G, 0:E].set(p["ln1_g"].astype(f32)[0])
    flat_slab = flat_slab.at[R_LN1B, 0:E].set(p["ln1_b"].astype(f32)[0])
    flat_slab = flat_slab.at[R_B1, 0:FFN].set(p["b1"].astype(f32)[0])
    flat_slab = flat_slab.at[R_B2, 0:E].set(p["b2"].astype(f32)[0])
    flat_slab = flat_slab.at[R_LN2G, 0:E].set(p["ln2_g"].astype(f32)[0])
    flat_slab = flat_slab.at[R_LN2B, 0:E].set(p["ln2_b"].astype(f32)[0])
    return {"head_slab": head_slab, "flat_slab": flat_slab}


# --------------------------------- wrapper ----------------------------------
@jax.jit
def transformer_encoder_layer(x_tbe, encoder_padding_mask, packed):
    """x_tbe: (T, B, E) float32; encoder_padding_mask: (B, T), 1 => pad; packed: pack_params(...)."""
    # row-major reshape only (no transpose): row n = t*B + b (t-major, b-minor fold).
    x2d = x_tbe.astype(jnp.float32).reshape(N, E)
    # bias-augmented activation: [x | 1 | 0-pad] so the qkv biases ride in the weight slab.
    x_aug = jnp.concatenate(
        [x2d, jnp.ones((N, 1), jnp.float32), jnp.zeros((N, EP - E - 1), jnp.float32)], axis=1)

    # additive attention bias (same-batch block structure + key padding), -1e9 applied once.
    # batch index of folded row n is n % B -- valid exactly because of the t-major fold above.
    batch_of = jnp.arange(N, dtype=jnp.int32) % B
    pad_flat = jnp.transpose(encoder_padding_mask.astype(jnp.float32)).reshape(N)  # token order
    allowed = (batch_of[:, None] == batch_of[None, :]) & (pad_flat[None, :] < 0.5)
    attn_bias = jnp.where(allowed, 0.0, NEG).astype(jnp.float32)                   # (N, N)
    attn_bias = jnp.pad(attn_bias, ((0, 0), (0, EP - N)))                          # lane-pad

    # one per-call slab: rows [0:N) = x_aug, rows [N:2N) = attention bias.
    xin = jnp.concatenate([x_aug, attn_bias], axis=0)                              # (2N, EP)

    vmem = pl.BlockSpec(memory_space=pltpu.MemorySpace.VMEM)
    out2d = pl.pallas_call(
        _encoder_layer_kernel,
        out_shape=jax.ShapeDtypeStruct((N, E), jnp.float32),
        in_specs=[vmem, vmem, vmem],
        out_specs=vmem,
    )(xin, packed["head_slab"], packed["flat_slab"])

    return out2d.reshape(T, B, E)                                                  # free reshape


# --------------------------- pure-JAX reference ----------------------------
def _reference(x_tbe, mask, p):
    x = jnp.transpose(x_tbe, (1, 0, 2))            # (B, T, E)
    scale = float(HD) ** -0.5
    q = (x @ p["wq"] + p["bq"][0]) * scale
    k = x @ p["wk"] + p["bk"][0]
    v = x @ p["wv"] + p["bv"][0]
    q = q.reshape(B, T, H, HD).transpose(0, 2, 1, 3)
    k = k.reshape(B, T, H, HD).transpose(0, 2, 1, 3)
    v = v.reshape(B, T, H, HD).transpose(0, 2, 1, 3)
    s = jnp.einsum("bhqd,bhkd->bhqk", q, k)
    s = s + jnp.where(mask[:, None, None, :] > 0.5, NEG, 0.0)
    pattn = jax.nn.softmax(s, axis=-1)
    a = jnp.einsum("bhqk,bhkd->bhqd", pattn, v).transpose(0, 2, 1, 3).reshape(B, T, QKV)
    y = a @ p["wo"] + p["bo"][0]

    def ln(z, g, b):
        mu = jnp.mean(z, -1, keepdims=True)
        var = jnp.mean((z - mu) ** 2, -1, keepdims=True)
        return (z - mu) * jax.lax.rsqrt(var + LN_EPS) * g[0] + b[0]

    z = ln(x + y, p["ln1_g"], p["ln1_b"])
    f = jnp.maximum(z @ p["w1"] + p["b1"][0], 0.0) @ p["w2"] + p["b2"][0]
    out = ln(z + f, p["ln2_g"], p["ln2_b"])
    return jnp.transpose(out, (1, 0, 2))


# --------------------------------- main ------------------------------------
if __name__ == "__main__":
    key = jax.random.PRNGKey(0)
    ks = jax.random.split(key, 12)

    def init(k, shape, scale=0.1):
        return jax.random.normal(k, shape, jnp.float32) * scale

    params = {
        "wq": init(ks[0], (E, QKV)), "bq": init(ks[1], (1, QKV), 0.02),
        "wk": init(ks[2], (E, QKV)), "bk": init(ks[3], (1, QKV), 0.02),
        "wv": init(ks[4], (E, QKV)), "bv": init(ks[5], (1, QKV), 0.02),
        "wo": init(ks[6], (QKV, E)), "bo": init(ks[7], (1, E), 0.02),
        "ln1_g": jnp.ones((1, E), jnp.float32), "ln1_b": jnp.zeros((1, E), jnp.float32),
        "w1": init(ks[8], (E, FFN)), "b1": init(ks[9], (1, FFN), 0.02),
        "w2": init(ks[10], (FFN, E)), "b2": init(ks[11], (1, E), 0.02),
        "ln2_g": jnp.ones((1, E), jnp.float32), "ln2_b": jnp.zeros((1, E), jnp.float32),
    }

    xkey, _ = jax.random.split(key)
    x = jax.random.normal(xkey, (T, B, E), jnp.float32)           # (seq, batch, emb)
    # padding mask: second batch element has its last 2 positions padded
    pad_mask = jnp.zeros((B, T), jnp.float32).at[1, T - 2:].set(1.0)

    packed = pack_params(params)                                  # one-time weight fusion/packing
    out = transformer_encoder_layer(x, pad_mask, packed)
    out = jax.block_until_ready(out)

    ref = _reference(x, pad_mask, params)
    assert out.shape == (T, B, E)
    assert jnp.allclose(out, ref, atol=1e-4, rtol=1e-4), "mismatch vs reference"

    print("KERNEL_OK")
</pallas_src>

<mosaic_0001>
module attributes {stable_mosaic.version = 11 : i64} {
  func.func @_encoder_layer_kernel(%arg0: memref<32x40xf32, #tpu.memory_space<vmem>>, %arg1: memref<4x48x128xf32, #tpu.memory_space<vmem>>, %arg2: memref<104x128xf32, #tpu.memory_space<vmem>>, %arg3: memref<16x32xf32, #tpu.memory_space<vmem>>) attributes {dimension_semantics = [], scalar_prefetch = 0 : i64, scratch_operands = 0 : i64, tpu.core_type = #tpu.core_type<tc>} {
    %c0 = arith.constant 0 : index
    %c0_0 = arith.constant 0 : index
    %0 = vector.load %arg0[%c0, %c0_0] : memref<32x40xf32, #tpu.memory_space<vmem>>, vector<16x40xf32>
    %1 = vector.extract_strided_slice %0 {offsets = [0, 0], sizes = [16, 32], strides = [1, 1]} : vector<16x40xf32> to vector<16x32xf32>
    %c16 = arith.constant 16 : index
    %c0_1 = arith.constant 0 : index
    %2 = vector.load %arg0[%c16, %c0_1] : memref<32x40xf32, #tpu.memory_space<vmem>>, vector<16x16xf32>
    %c0_2 = arith.constant 0 : index
    %c0_3 = arith.constant 0 : index
    %c0_4 = arith.constant 0 : index
    %3 = vector.load %arg1[%c0_2, %c0_3, %c0_4] : memref<4x48x128xf32, #tpu.memory_space<vmem>>, vector<4x40x24xf32>
    %4 = vector.shape_cast %0 : vector<16x40xf32> to vector<1x16x40xf32>
    %5 = vector.shape_cast %4 : vector<1x16x40xf32> to vector<1x16x40xf32>
    %6 = vector.broadcast %5 : vector<1x16x40xf32> to vector<4x16x40xf32>
    %cst = arith.constant dense<0.000000e+00> : vector<4x16x24xf32>
    %7 = tpu.matmul %6, %3, %cst {dimension_numbers = #tpu.dot_dimension_numbers<[2], [1], [1], [2], [0, 0, 0, 1, 1, 2], [0], [0]>} : vector<4x16x40xf32>, vector<4x40x24xf32>, vector<4x16x24xf32> -> vector<4x16x24xf32>
    %8 = vector.extract_strided_slice %7 {offsets = [0, 0, 0], sizes = [4, 16, 8], strides = [1, 1, 1]} : vector<4x16x24xf32> to vector<4x16x8xf32>
    %9 = vector.extract_strided_slice %7 {offsets = [0, 0, 8], sizes = [4, 16, 8], strides = [1, 1, 1]} : vector<4x16x24xf32> to vector<4x16x8xf32>
    %10 = vector.extract_strided_slice %7 {offsets = [0, 0, 16], sizes = [4, 16, 8], strides = [1, 1, 1]} : vector<4x16x24xf32> to vector<4x16x8xf32>
    %cst_5 = arith.constant dense<0.000000e+00> : vector<4x16x16xf32>
    %11 = tpu.matmul %8, %9, %cst_5 {dimension_numbers = #tpu.dot_dimension_numbers<[2], [2], [1], [1], [0, 0, 0, 1, 1, 1], [0], [0]>} : vector<4x16x8xf32>, vector<4x16x8xf32>, vector<4x16x16xf32> -> vector<4x16x16xf32>
    %12 = vector.shape_cast %2 : vector<16x16xf32> to vector<1x16x16xf32>
    %13 = vector.broadcast %12 : vector<1x16x16xf32> to vector<4x16x16xf32>
    %14 = arith.addf %11, %13 : vector<4x16x16xf32>
    %cst_6 = arith.constant dense<0xFF800000> : vector<4x16xf32>
    %15 = vector.multi_reduction <maximumf>, %14, %cst_6 [2] : vector<4x16x16xf32> to vector<4x16xf32>
    %16 = vector.shape_cast %15 : vector<4x16xf32> to vector<4x16x1xf32>
    %17 = vector.broadcast %16 : vector<4x16x1xf32> to vector<4x16x16xf32>
    %18 = arith.subf %14, %17 : vector<4x16x16xf32>
    %19 = math.exp %18 : vector<4x16x16xf32>
    %cst_7 = arith.constant dense<0.000000e+00> : vector<4x16xf32>
    %20 = vector.multi_reduction <add>, %19, %cst_7 [2] : vector<4x16x16xf32> to vector<4x16xf32>
    %21 = vector.shape_cast %20 : vector<4x16xf32> to vector<4x16x1xf32>
    %cst_8 = arith.constant 1.000000e+00 : f32
    %22 = vector.broadcast %cst_8 : f32 to vector<4x16x1xf32>
    %23 = arith.divf %22, %21 : vector<4x16x1xf32>
    %24 = vector.broadcast %23 : vector<4x16x1xf32> to vector<4x16x16xf32>
    %25 = arith.mulf %19, %24 : vector<4x16x16xf32>
    %cst_9 = arith.constant dense<0.000000e+00> : vector<4x16x8xf32>
    %26 = tpu.matmul %25, %10, %cst_9 {dimension_numbers = #tpu.dot_dimension_numbers<[2], [1], [1], [2], [0, 0, 0, 1, 1, 2], [0], [0]>} : vector<4x16x16xf32>, vector<4x16x8xf32>, vector<4x16x8xf32> -> vector<4x16x8xf32>
    %c0_10 = arith.constant 0 : index
    %c40 = arith.constant 40 : index
    %c0_11 = arith.constant 0 : index
    %27 = vector.load %arg1[%c0_10, %c40, %c0_11] : memref<4x48x128xf32, #tpu.memory_space<vmem>>, vector<4x8x32xf32>
    %cst_12 = arith.constant dense<0.000000e+00> : vector<4x16x32xf32>
    %28 = tpu.matmul %26, %27, %cst_12 {dimension_numbers = #tpu.dot_dimension_numbers<[2], [1], [1], [2], [0, 0, 0, 1, 1, 2], [0], [0]>} : vector<4x16x8xf32>, vector<4x8x32xf32>, vector<4x16x32xf32> -> vector<4x16x32xf32>
    %c96 = arith.constant 96 : index
    %c0_13 = arith.constant 0 : index
    %29 = vector.load %arg2[%c96, %c0_13] : memref<104x128xf32, #tpu.memory_space<vmem>>, vector<1x32xf32>
    %cst_14 = arith.constant dense<0.000000e+00> : vector<16x32xf32>
    %30 = vector.multi_reduction <add>, %28, %cst_14 [0] : vector<4x16x32xf32> to vector<16x32xf32>
    %31 = vector.broadcast %29 : vector<1x32xf32> to vector<16x32xf32>
    %32 = arith.addf %30, %31 : vector<16x32xf32>
    %c97 = arith.constant 97 : index
    %c0_15 = arith.constant 0 : index
    %33 = vector.load %arg2[%c97, %c0_15] : memref<104x128xf32, #tpu.memory_space<vmem>>, vector<1x32xf32>
    %c98 = arith.constant 98 : index
    %c0_16 = arith.constant 0 : index
    %34 = vector.load %arg2[%c98, %c0_16] : memref<104x128xf32, #tpu.memory_space<vmem>>, vector<1x32xf32>
    %35 = arith.addf %1, %32 : vector<16x32xf32>
    %cst_17 = arith.constant dense<0.000000e+00> : vector<16xf32>
    %36 = vector.multi_reduction <add>, %35, %cst_17 [1] : vector<16x32xf32> to vector<16xf32>
    %37 = vector.shape_cast %36 : vector<16xf32> to vector<16x1xf32>
    %cst_18 = arith.constant 3.200000e+01 : f32
    %38 = vector.broadcast %cst_18 : f32 to vector<16x1xf32>
    %39 = arith.divf %37, %38 : vector<16x1xf32>
    %40 = vector.broadcast %39 : vector<16x1xf32> to vector<16x32xf32>
    %41 = arith.subf %35, %40 : vector<16x32xf32>
    %42 = arith.mulf %41, %41 : vector<16x32xf32>
    %cst_19 = arith.constant dense<0.000000e+00> : vector<16xf32>
    %43 = vector.multi_reduction <add>, %42, %cst_19 [1] : vector<16x32xf32> to vector<16xf32>
    %44 = vector.shape_cast %43 : vector<16xf32> to vector<16x1xf32>
    %cst_20 = arith.constant 3.200000e+01 : f32
    %45 = vector.broadcast %cst_20 : f32 to vector<16x1xf32>
    %46 = arith.divf %44, %45 : vector<16x1xf32>
    %47 = vector.broadcast %39 : vector<16x1xf32> to vector<16x32xf32>
    %48 = arith.subf %35, %47 : vector<16x32xf32>
    %cst_21 = arith.constant 9.99999974E-6 : f32
    %49 = vector.broadcast %cst_21 : f32 to vector<16x1xf32>
    %50 = arith.addf %46, %49 : vector<16x1xf32>
    %51 = math.rsqrt %50 : vector<16x1xf32>
    %52 = vector.broadcast %51 : vector<16x1xf32> to vector<16x32xf32>
    %53 = arith.mulf %48, %52 : vector<16x32xf32>
    %54 = vector.broadcast %33 : vector<1x32xf32> to vector<16x32xf32>
    %55 = arith.mulf %53, %54 : vector<16x32xf32>
    %56 = vector.broadcast %34 : vector<1x32xf32> to vector<16x32xf32>
    %57 = arith.addf %55, %56 : vector<16x32xf32>
    %c0_22 = arith.constant 0 : index
    %c0_23 = arith.constant 0 : index
    %58 = vector.load %arg2[%c0_22, %c0_23] : memref<104x128xf32, #tpu.memory_space<vmem>>, vector<32x64xf32>
    %c32 = arith.constant 32 : index
    %c0_24 = arith.constant 0 : index
    %59 = vector.load %arg2[%c32, %c0_24] : memref<104x128xf32, #tpu.memory_space<vmem>>, vector<64x32xf32>
    %c99 = arith.constant 99 : index
    %c0_25 = arith.constant 0 : index
    %60 = vector.load %arg2[%c99, %c0_25] : memref<104x128xf32, #tpu.memory_space<vmem>>, vector<1x64xf32>
    %c100 = arith.constant 100 : index
    %c0_26 = arith.constant 0 : index
    %61 = vector.load %arg2[%c100, %c0_26] : memref<104x128xf32, #tpu.memory_space<vmem>>, vector<1x32xf32>
    %cst_27 = arith.constant dense<0.000000e+00> : vector<16x64xf32>
    %62 = tpu.matmul %57, %58, %cst_27 {dimension_numbers = #tpu.dot_dimension_numbers<[1], [0], [0], [1], [0, 0, 1, 1], [], []>} : vector<16x32xf32>, vector<32x64xf32>, vector<16x64xf32> -> vector<16x64xf32>
    %63 = vector.broadcast %60 : vector<1x64xf32> to vector<16x64xf32>
    %64 = arith.addf %62, %63 : vector<16x64xf32>
    %cst_28 = arith.constant 0.000000e+00 : f32
    %65 = vector.broadcast %cst_28 : f32 to vector<16x64xf32>
    %66 = arith.maximumf %64, %65 : vector<16x64xf32>
    %cst_29 = arith.constant dense<0.000000e+00> : vector<16x32xf32>
    %67 = tpu.matmul %66, %59, %cst_29 {dimension_numbers = #tpu.dot_dimension_numbers<[1], [0], [0], [1], [0, 0, 1, 1], [], []>} : vector<16x64xf32>, vector<64x32xf32>, vector<16x32xf32> -> vector<16x32xf32>
    %68 = vector.broadcast %61 : vector<1x32xf32> to vector<16x32xf32>
    %69 = arith.addf %67, %68 : vector<16x32xf32>
    %c101 = arith.constant 101 : index
    %c0_30 = arith.constant 0 : index
    %70 = vector.load %arg2[%c101, %c0_30] : memref<104x128xf32, #tpu.memory_space<vmem>>, vector<1x32xf32>
    %c102 = arith.constant 102 : index
    %c0_31 = arith.constant 0 : index
    %71 = vector.load %arg2[%c102, %c0_31] : memref<104x128xf32, #tpu.memory_space<vmem>>, vector<1x32xf32>
    %72 = arith.addf %57, %69 : vector<16x32xf32>
    %cst_32 = arith.constant dense<0.000000e+00> : vector<16xf32>
    %73 = vector.multi_reduction <add>, %72, %cst_32 [1] : vector<16x32xf32> to vector<16xf32>
    %74 = vector.shape_cast %73 : vector<16xf32> to vector<16x1xf32>
    %cst_33 = arith.constant 3.200000e+01 : f32
    %75 = vector.broadcast %cst_33 : f32 to vector<16x1xf32>
    %76 = arith.divf %74, %75 : vector<16x1xf32>
    %77 = vector.broadcast %76 : vector<16x1xf32> to vector<16x32xf32>
    %78 = arith.subf %72, %77 : vector<16x32xf32>
    %79 = arith.mulf %78, %78 : vector<16x32xf32>
    %cst_34 = arith.constant dense<0.000000e+00> : vector<16xf32>
    %80 = vector.multi_reduction <add>, %79, %cst_34 [1] : vector<16x32xf32> to vector<16xf32>
    %81 = vector.shape_cast %80 : vector<16xf32> to vector<16x1xf32>
    %cst_35 = arith.constant 3.200000e+01 : f32
    %82 = vector.broadcast %cst_35 : f32 to vector<16x1xf32>
    %83 = arith.divf %81, %82 : vector<16x1xf32>
    %84 = vector.broadcast %76 : vector<16x1xf32> to vector<16x32xf32>
    %85 = arith.subf %72, %84 : vector<16x32xf32>
    %cst_36 = arith.constant 9.99999974E-6 : f32
    %86 = vector.broadcast %cst_36 : f32 to vector<16x1xf32>
    %87 = arith.addf %83, %86 : vector<16x1xf32>
    %88 = math.rsqrt %87 : vector<16x1xf32>
    %89 = vector.broadcast %88 : vector<16x1xf32> to vector<16x32xf32>
    %90 = arith.mulf %85, %89 : vector<16x32xf32>
    %91 = vector.broadcast %70 : vector<1x32xf32> to vector<16x32xf32>
    %92 = arith.mulf %90, %91 : vector<16x32xf32>
    %93 = vector.broadcast %71 : vector<1x32xf32> to vector<16x32xf32>
    %94 = arith.addf %92, %93 : vector<16x32xf32>
    %c0_37 = arith.constant 0 : index
    %c0_38 = arith.constant 0 : index
    %95 = vector.load %arg3[%c0_37, %c0_38] : memref<16x32xf32, #tpu.memory_space<vmem>>, vector<16x32xf32>
    tpu.vector_store %arg3[%c0_37, %c0_38], %94 {strides = array<i32>} : memref<16x32xf32, #tpu.memory_space<vmem>>, vector<16x32xf32>,
    return
  }
}

</mosaic_0001>

<llo_original>
// kernel: transformer_encoder_layer.1
$region0: #{transformer_encoder_layer.1}
  #allocation0 [shape = 'u32[]', space=smem, size = 0x4, offset = 0x4, fixed_abs, tag = 'smem constant byte address 0x4 - core index']
  #allocation1 [shape = 'u32[144,128]{1,0:T(1,128)}', space=vmem, size = 0x12000, scoped, tag = 'internal scratch']
  %s0 = inlined_call_operand.vmem [shape: f32[32,40], index: 0, kind: input, shape index: {}]
  %s1 = inlined_call_operand.hbm [shape: f32[4,48,128], index: 1, kind: input, shape index: {}]
  %s2 = inlined_call_operand.vmem [shape: f32[104,128], index: 2, kind: input, shape index: {}]
  %s3 = inlined_call_operand.hbm [shape: f32[16,32], index: 3, kind: output, shape index: {}]
  %s4 = sld [smem:[#allocation0]]
  $region26: #{transformer_encoder_layer.1} parent=0
    _
  %s6 = ssub.s32 1, %s4
  %s7 = scalar_select 0, %s6, %s4
  $region1: #{transformer_encoder_layer.1} parent=0
    #allocation2 [shape = 'u8[98304]{0}', space=vmem, size = 0x18000, scoped, tag = 'input window, operand 1, single buffered']
    #allocation3 [shape = 's32[1]{0}', space=sflag, size = 0x4, scoped, tag = 'scoped memory for transformer_encoder_layer.1']
    #allocation4 [shape = 's32[1]{0}', space=sflag, size = 0x4, scoped, tag = 'scoped memory for transformer_encoder_layer.1']
    #allocation5 [shape = 'u8[8192]{0}', space=vmem, size = 0x2000, scoped, tag = 'output window, operand 0, single buffered']
    %8 = vsyncpa [#allocation3], 0
    %9 = vsyncpa [#allocation4], 0
    // Predicated region
    $region2: #{transformer_encoder_layer.1} parent=1 // pred_check
      _
    $region3: #{transformer_encoder_layer.1} parent=1 // pred_check_branch
      %11 = sbr.rel (0) target = $region5
    $region4: #{transformer_encoder_layer.1} parent=1 // pred_region
      _
    $region5: #{transformer_encoder_layer.1} parent=1 // pred_fallthru
      _
    // Predicated region
    $region6: #{transformer_encoder_layer.1} parent=1 // pred_check
      _
    $region7: #{transformer_encoder_layer.1} parent=1 // pred_check_branch
      %13 = sbr.rel (0) target = $region9
    $region8: #{transformer_encoder_layer.1} parent=1 // pred_region
      %s15 = ssub.s32 3072, 3072
      %16 = vsyncadd [#allocation3], %s15
      %s17 = sshll.u32 [#allocation2], 4
      %s18 = int_to_ptr.vmem [resolvable:$true] %s17
      %23 = dma.hbm_to_vmem [thread:$0]  %s1, 3072, %s18, [#allocation3], 128, 128, 8
    $region9: #{transformer_encoder_layer.1} parent=1 // pred_fallthru
      _
    // Predicated region
    $region10: #{transformer_encoder_layer.1} parent=1 // pred_check
      _
    $region11: #{transformer_encoder_layer.1} parent=1 // pred_check_branch
      %25 = sbr.rel (0) target = $region13
    $region12: #{transformer_encoder_layer.1} parent=1 // pred_region
      _
    $region13: #{transformer_encoder_layer.1} parent=1 // pred_fallthru
      _
    // Predicated region
    $region14: #{transformer_encoder_layer.1} parent=1 // pred_check
      _
    $region15: #{transformer_encoder_layer.1} parent=1 // pred_check_branch
      %27 = sbr.rel (0) target = $region17
    $region16: #{transformer_encoder_layer.1} parent=1 // pred_region
      %28 = dma.done [#allocation3], 3072
    $region17: #{transformer_encoder_layer.1} parent=1 // pred_fallthru
      _
    %v29 = vld [vmem:[%s0] sm:$0xff]
    %v30 = vld [vmem:[%s0 + $0x8] sm:$0xff]
    %v31 = vld [vmem:[%s0 + $0x10] sm:$0xff]
    %v32 = vld [vmem:[%s0 + $0x18] sm:$0xff]
    %v33 = vld [vmem:[#allocation2] sm:$0xff]
    %v34 = vld [vmem:[#allocation2 + $0x8] sm:$0xff]
    %v35 = vld [vmem:[#allocation2 + $0x10] sm:$0xff]
    %v36 = vld [vmem:[#allocation2 + $0x18] sm:$0xff]
    %v37 = vld [vmem:[#allocation2 + $0x20] sm:$0xff]
    %v38 = vld [vmem:[#allocation2 + $0x30] sm:$0xff]
    %v39 = vld [vmem:[#allocation2 + $0x38] sm:$0xff]
    %v40 = vld [vmem:[#allocation2 + $0x40] sm:$0xff]
    %v41 = vld [vmem:[#allocation2 + $0x48] sm:$0xff]
    %v42 = vld [vmem:[#allocation2 + $0x50] sm:$0xff]
    %v43 = vld [vmem:[#allocation2 + $0x60] sm:$0xff]
    %v44 = vld [vmem:[#allocation2 + $0x68] sm:$0xff]
    %v45 = vld [vmem:[#allocation2 + $0x70] sm:$0xff]
    %v46 = vld [vmem:[#allocation2 + $0x78] sm:$0xff]
    %v47 = vld [vmem:[#allocation2 + $0x80] sm:$0xff]
    %v48 = vld [vmem:[#allocation2 + $0x90] sm:$0xff]
    %v49 = vld [vmem:[#allocation2 + $0x98] sm:$0xff]
    %v50 = vld [vmem:[#allocation2 + $0xa0] sm:$0xff]
    %v51 = vld [vmem:[#allocation2 + $0xa8] sm:$0xff]
    %v52 = vld [vmem:[#allocation2 + $0xb0] sm:$0xff]
    %vm53 = vcmask 326656
    %v55 = vsel %vm53, %v29, 0
    %v58 = vsel %vm53, %v30, 0
    %60 = vmatprep.subr.mxu0 0.0
    %61 = vmatpush1.msra.mxu0 %v33
    %62 = vmatprep.subr.mxu0 0.0
    %63 = vmatpush1.msra.mxu0 %v34
    %64 = vmatprep.subr.mxu0 0.0
    %65 = vmatpush1.msra.mxu0 %v35
    %66 = vmatprep.subr.mxu0 0.0
    %67 = vmatpush1.msra.mxu0 %v36
    %68 = vmatprep.subr.mxu0 0.0
    %69 = vmatpush1.msra.mxu0 %v37
    %70 = vmatprep.subr.mxu0 0.0
    %71 = vmatpush1.msra.mxu0 0.0
    %72 = vmatprep.subr.mxu0 0.0
    %73 = vmatpush1.msra.mxu0 0.0
    %74 = vmatprep.subr.mxu0 0.0
    %75 = vmatpush1.msra.mxu0 0.0
    %76 = vmatprep.subr.mxu0 0.0
    %77 = vmatpush1.msra.mxu0 0.0
    %78 = vmatprep.subr.mxu0 0.0
    %79 = vmatpush1.msra.mxu0 0.0
    %80 = vmatprep.subr.mxu0 0.0
    %81 = vmatpush1.msra.mxu0 0.0
    %82 = vmatprep.subr.mxu0 0.0
    %83 = vmatpush1.msra.mxu0 0.0
    %84 = vmatprep.subr.mxu0 0.0
    %85 = vmatpush1.msra.mxu0 0.0
    %86 = vmatprep.subr.mxu0 0.0
    %87 = vmatpush1.msra.mxu0 0.0
    %88 = vmatprep.subr.mxu0 0.0
    %89 = vmatpush1.msra.mxu0 0.0
    %90 = vmatprep.subr.mxu0 0.0
    %91 = vmatpush1.msra.mxu0 0.0
    %92 = vmatprep.subr.mxu0 0.0
    %93 = vmatpush1.msra.mxu0 0.0
    %94 = vmatprep.subr.mxu0 0.0
    %95 = vmatpush1.msra.mxu0 0.0
    %96 = vmatprep.subr.mxu0 0.0
    %97 = vmatpush1.msra.mxu0 0.0
    %98 = vmatprep.subr.mxu0 0.0
    %99 = vmatpush1.msra.mxu0 0.0
    %100 = vmatprep.subr.mxu0 0.0
    %101 = vmatpush1.msra.mxu0 0.0
    %102 = vmatprep.subr.mxu0 0.0
    %103 = vmatpush1.msra.mxu0 0.0
    %104 = vmatprep.subr.mxu0 0.0
    %105 = vmatpush1.msra.mxu0 0.0
    %106 = vmatprep.subr.mxu0 0.0
    %107 = vmatpush1.msra.mxu0 0.0
    %108 = vmatprep.subr.mxu0 0.0
    %109 = vmatpush1.msra.mxu0 0.0
    %110 = vmatprep.subr.mxu0 0.0
    %111 = vmatpush1.msra.mxu0 0.0
    %112 = vmatprep.subr.mxu0 0.0
    %113 = vmatpush1.msra.mxu0 0.0
    %114 = vmatprep.subr.mxu0 0.0
    %115 = vmatpush1.msra.mxu0 0.0
    %116 = vmatprep.subr.mxu0 0.0
    %117 = vmatpush1.msra.mxu0 0.0
    %118 = vmatprep.subr.mxu0 0.0
    %119 = vmatpush1.msra.mxu0 0.0
    %120 = vmatprep.subr.mxu0 0.0
    %121 = vmatpush1.msra.mxu0 0.0
    %122 = vmatprep.subr.mxu0 0.0
    %123 = vmatpush1.msra.mxu0 0.0
    %124 = vmatprep.mubr.f32.mxu0 0.0
    %125 = vmatmul.mubr.f32.gmra.mrb[0].mxu0 %v55
    %v126 = vpop.f32.mrb[0].mxu0
    %v127 = vadd.f32 0.0, %v126
    %v128 = vpop.f32.mrb[0].mxu0
    %129 = vmatprep.mubr.f32.mxu0 0.0
    %130 = vmatmul.mubr.f32.gmra.mrb[0].mxu0 %v58
    %v131 = vpop.f32.mrb[0].mxu0
    %v132 = vadd.f32 0.0, %v131
    %v133 = vpop.f32.mrb[0].mxu0
    %134 = vdwg.mxu0
    %135 = vmatprep.subr.mxu0 0.0
    %136 = vmatpush1.msra.mxu0 %v38
    %137 = vmatprep.subr.mxu0 0.0
    %138 = vmatpush1.msra.mxu0 %v39
    %139 = vmatprep.subr.mxu0 0.0
    %140 = vmatpush1.msra.mxu0 %v40
    %141 = vmatprep.subr.mxu0 0.0
    %142 = vmatpush1.msra.mxu0 %v41
    %143 = vmatprep.subr.mxu0 0.0
    %144 = vmatpush1.msra.mxu0 %v42
    %145 = vmatprep.subr.mxu0 0.0
    %146 = vmatpush1.msra.mxu0 0.0
    %147 = vmatprep.subr.mxu0 0.0
    %148 = vmatpush1.msra.mxu0 0.0
    %149 = vmatprep.subr.mxu0 0.0
    %150 = vmatpush1.msra.mxu0 0.0
    %151 = vmatprep.subr.mxu0 0.0
    %152 = vmatpush1.msra.mxu0 0.0
    %153 = vmatprep.subr.mxu0 0.0
    %154 = vmatpush1.msra.mxu0 0.0
    %155 = vmatprep.subr.mxu0 0.0
    %156 = vmatpush1.msra.mxu0 0.0
    %157 = vmatprep.subr.mxu0 0.0
    %158 = vmatpush1.msra.mxu0 0.0
    %159 = vmatprep.subr.mxu0 0.0
    %160 = vmatpush1.msra.mxu0 0.0
    %161 = vmatprep.subr.mxu0 0.0
    %162 = vmatpush1.msra.mxu0 0.0
    %163 = vmatprep.subr.mxu0 0.0
    %164 = vmatpush1.msra.mxu0 0.0
    %165 = vmatprep.subr.mxu0 0.0
    %166 = vmatpush1.msra.mxu0 0.0
    %167 = vmatprep.subr.mxu0 0.0
    %168 = vmatpush1.msra.mxu0 0.0
    %169 = vmatprep.subr.mxu0 0.0
    %170 = vmatpush1.msra.mxu0 0.0
    %171 = vmatprep.subr.mxu0 0.0
    %172 = vmatpush1.msra.mxu0 0.0
    %173 = vmatprep.subr.mxu0 0.0
    %174 = vmatpush1.msra.mxu0 0.0
    %175 = vmatprep.subr.mxu0 0.0
    %176 = vmatpush1.msra.mxu0 0.0
    %177 = vmatprep.subr.mxu0 0.0
    %178 = vmatpush1.msra.mxu0 0.0
    %179 = vmatprep.subr.mxu0 0.0
    %180 = vmatpush1.msra.mxu0 0.0
    %181 = vmatprep.subr.mxu0 0.0
    %182 = vmatpush1.msra.mxu0 0.0
    %183 = vmatprep.subr.mxu0 0.0
    %184 = vmatpush1.msra.mxu0 0.0
    %185 = vmatprep.subr.mxu0 0.0
    %186 = vmatpush1.msra.mxu0 0.0
    %187 = vmatprep.subr.mxu0 0.0
    %188 = vmatpush1.msra.mxu0 0.0
    %189 = vmatprep.subr.mxu0 0.0
    %190 = vmatpush1.msra.mxu0 0.0
    %191 = vmatprep.subr.mxu0 0.0
    %192 = vmatpush1.msra.mxu0 0.0
    %193 = vmatprep.subr.mxu0 0.0
    %194 = vmatpush1.msra.mxu0 0.0
    %195 = vmatprep.subr.mxu0 0.0
    %196 = vmatpush1.msra.mxu0 0.0
    %197 = vmatprep.subr.mxu0 0.0
    %198 = vmatpush1.msra.mxu0 0.0
    %199 = vmatprep.mubr.f32.mxu0 0.0
    %200 = vmatmul.mubr.f32.gmra.mrb[0].mxu0 %v55
    %v201 = vpop.f32.mrb[0].mxu0
    %v202 = vadd.f32 0.0, %v201
    %v203 = vpop.f32.mrb[0].mxu0
    %204 = vmatprep.mubr.f32.mxu0 0.0
    %205 = vmatmul.mubr.f32.gmra.mrb[0].mxu0 %v58
    %v206 = vpop.f32.mrb[0].mxu0
    %v207 = vadd.f32 0.0, %v206
    %v208 = vpop.f32.mrb[0].mxu0
    %209 = vdwg.mxu0
    %210 = vmatprep.subr.mxu0 0.0
    %211 = vmatpush1.msra.mxu0 %v43
    %212 = vmatprep.subr.mxu0 0.0
    %213 = vmatpush1.msra.mxu0 %v44
    %214 = vmatprep.subr.mxu0 0.0
    %215 = vmatpush1.msra.mxu0 %v45
    %216 = vmatprep.subr.mxu0 0.0
    %217 = vmatpush1.msra.mxu0 %v46
    %218 = vmatprep.subr.mxu0 0.0
    %219 = vmatpush1.msra.mxu0 %v47
    %220 = vmatprep.subr.mxu0 0.0
    %221 = vmatpush1.msra.mxu0 0.0
    %222 = vmatprep.subr.mxu0 0.0
    %223 = vmatpush1.msra.mxu0 0.0
    %224 = vmatprep.subr.mxu0 0.0
    %225 = vmatpush1.msra.mxu0 0.0
    %226 = vmatprep.subr.mxu0 0.0
    %227 = vmatpush1.msra.mxu0 0.0
    %228 = vmatprep.subr.mxu0 0.0
    %229 = vmatpush1.msra.mxu0 0.0
    %230 = vmatprep.subr.mxu0 0.0
    %231 = vmatpush1.msra.mxu0 0.0
    %232 = vmatprep.subr.mxu0 0.0
    %233 = vmatpush1.msra.mxu0 0.0
    %234 = vmatprep.subr.mxu0 0.0
    %235 = vmatpush1.msra.mxu0 0.0
    %236 = vmatprep.subr.mxu0 0.0
    %237 = vmatpush1.msra.mxu0 0.0
    %238 = vmatprep.subr.mxu0 0.0
    %239 = vmatpush1.msra.mxu0 0.0
    %240 = vmatprep.subr.mxu0 0.0
    %241 = vmatpush1.msra.mxu0 0.0
    %242 = vmatprep.subr.mxu0 0.0
    %243 = vmatpush1.msra.mxu0 0.0
    %244 = vmatprep.subr.mxu0 0.0
    %245 = vmatpush1.msra.mxu0 0.0
    %246 = vmatprep.subr.mxu0 0.0
    %247 = vmatpush1.msra.mxu0 0.0
    %248 = vmatprep.subr.mxu0 0.0
    %249 = vmatpush1.msra.mxu0 0.0
    %250 = vmatprep.subr.mxu0 0.0
    %251 = vmatpush1.msra.mxu0 0.0
    %252 = vmatprep.subr.mxu0 0.0
    %253 = vmatpush1.msra.mxu0 0.0
    %254 = vmatprep.subr.mxu0 0.0
    %255 = vmatpush1.msra.mxu0 0.0
    %256 = vmatprep.subr.mxu0 0.0
    %257 = vmatpush1.msra.mxu0 0.0
    %258 = vmatprep.subr.mxu0 0.0
    %259 = vmatpush1.msra.mxu0 0.0
    %260 = vmatprep.subr.mxu0 0.0
    %261 = vmatpush1.msra.mxu0 0.0
    %262 = vmatprep.subr.mxu0 0.0
    %263 = vmatpush1.msra.mxu0 0.0
    %264 = vmatprep.subr.mxu0 0.0
    %265 = vmatpush1.msra.mxu0 0.0
    %266 = vmatprep.subr.mxu0 0.0
    %267 = vmatpush1.msra.mxu0 0.0
    %268 = vmatprep.subr.mxu0 0.0
    %269 = vmatpush1.msra.mxu0 0.0
    %270 = vmatprep.subr.mxu0 0.0
    %271 = vmatpush1.msra.mxu0 0.0
    %272 = vmatprep.subr.mxu0 0.0
    %273 = vmatpush1.msra.mxu0 0.0
    %274 = vmatprep.mubr.f32.mxu0 0.0
    %275 = vmatmul.mubr.f32.gmra.mrb[0].mxu0 %v55
    %v276 = vpop.f32.mrb[0].mxu0
    %v277 = vadd.f32 0.0, %v276
    %v278 = vpop.f32.mrb[0].mxu0
    %279 = vmatprep.mubr.f32.mxu0 0.0
    %280 = vmatmul.mubr.f32.gmra.mrb[0].mxu0 %v58
    %v281 = vpop.f32.mrb[0].mxu0
    %v282 = vadd.f32 0.0, %v281
    %v283 = vpop.f32.mrb[0].mxu0
    %284 = vdwg.mxu0
    %285 = vmatprep.subr.mxu0 0.0
    %286 = vmatpush1.msra.mxu0 %v48
    %287 = vmatprep.subr.mxu0 0.0
    %288 = vmatpush1.msra.mxu0 %v49
    %289 = vmatprep.subr.mxu0 0.0
    %290 = vmatpush1.msra.mxu0 %v50
    %291 = vmatprep.subr.mxu0 0.0
    %292 = vmatpush1.msra.mxu0 %v51
    %293 = vmatprep.subr.mxu0 0.0
    %294 = vmatpush1.msra.mxu0 %v52
    %295 = vmatprep.subr.mxu0 0.0
    %296 = vmatpush1.msra.mxu0 0.0
    %297 = vmatprep.subr.mxu0 0.0
    %298 = vmatpush1.msra.mxu0 0.0
    %299 = vmatprep.subr.mxu0 0.0
    %300 = vmatpush1.msra.mxu0 0.0
    %301 = vmatprep.subr.mxu0 0.0
    %302 = vmatpush1.msra.mxu0 0.0
    %303 = vmatprep.subr.mxu0 0.0
    %304 = vmatpush1.msra.mxu0 0.0
    %305 = vmatprep.subr.mxu0 0.0
    %306 = vmatpush1.msra.mxu0 0.0
    %307 = vmatprep.subr.mxu0 0.0
    %308 = vmatpush1.msra.mxu0 0.0
    %309 = vmatprep.subr.mxu0 0.0
    %310 = vmatpush1.msra.mxu0 0.0
    %311 = vmatprep.subr.mxu0 0.0
    %312 = vmatpush1.msra.mxu0 0.0
    %313 = vmatprep.subr.mxu0 0.0
    %314 = vmatpush1.msra.mxu0 0.0
    %315 = vmatprep.subr.mxu0 0.0
    %316 = vmatpush1.msra.mxu0 0.0
    %317 = vmatprep.subr.mxu0 0.0
    %318 = vmatpush1.msra.mxu0 0.0
    %319 = vmatprep.subr.mxu0 0.0
    %320 = vmatpush1.msra.mxu0 0.0
    %321 = vmatprep.subr.mxu0 0.0
    %322 = vmatpush1.msra.mxu0 0.0
    %323 = vmatprep.subr.mxu0 0.0
    %324 = vmatpush1.msra.mxu0 0.0
    %325 = vmatprep.subr.mxu0 0.0
    %326 = vmatpush1.msra.mxu0 0.0
    %327 = vmatprep.subr.mxu0 0.0
    %328 = vmatpush1.msra.mxu0 0.0
    %329 = vmatprep.subr.mxu0 0.0
    %330 = vmatpush1.msra.mxu0 0.0
    %331 = vmatprep.subr.mxu0 0.0
    %332 = vmatpush1.msra.mxu0 0.0
    %333 = vmatprep.subr.mxu0 0.0
    %334 = vmatpush1.msra.mxu0 0.0
    %335 = vmatprep.subr.mxu0 0.0
    %336 = vmatpush1.msra.mxu0 0.0
    %337 = vmatprep.subr.mxu0 0.0
    %338 = vmatpush1.msra.mxu0 0.0
    %339 = vmatprep.subr.mxu0 0.0
    %340 = vmatpush1.msra.mxu0 0.0
    %341 = vmatprep.subr.mxu0 0.0
    %342 = vmatpush1.msra.mxu0 0.0
    %343 = vmatprep.subr.mxu0 0.0
    %344 = vmatpush1.msra.mxu0 0.0
    %345 = vmatprep.subr.mxu0 0.0
    %346 = vmatpush1.msra.mxu0 0.0
    %347 = vmatprep.subr.mxu0 0.0
    %348 = vmatpush1.msra.mxu0 0.0
    %349 = vmatprep.mubr.f32.mxu0 0.0
    %350 = vmatmul.mubr.f32.gmra.mrb[0].mxu0 %v55
    %v351 = vpop.f32.mrb[0].mxu0
    %v352 = vadd.f32 0.0, %v351
    %v353 = vpop.f32.mrb[0].mxu0
    %354 = vmatprep.mubr.f32.mxu0 0.0
    %355 = vmatmul.mubr.f32.gmra.mrb[0].mxu0 %v58
    %v356 = vpop.f32.mrb[0].mxu0
    %v357 = vadd.f32 0.0, %v356
    %v358 = vpop.f32.mrb[0].mxu0
    %359 = vdwg.mxu0
    %362 = vrot.lane.b32.xlu0 %v127, 120
    %v363 = vpop.permute.xlu0 %362
    %364 = vrot.lane.b32.xlu0 %v132, 120
    %v365 = vpop.permute.xlu0 %364
    %vm366 = vcmask 64512
    %v367 = vsel %vm366, %v127, 0
    %v369 = vsel %vm366, %v132, 0
    %v371 = vsel %vm366, %v363, 0
    %v373 = vsel %vm366, %v365, 0
    %375 = vmatprep.subr.mxu0 0.0
    %376 = vmatpush1.xpose.msra.mxu0 %v371
    %377 = vmatprep.subr.mxu0 0.0
    %378 = vmatpush1.xpose.msra.mxu0 %v373
    %379 = vmatprep.subr.mxu0 0.0
    %380 = vmatpush1.xpose.msra.mxu0 0.0
    %381 = vmatprep.subr.mxu0 0.0
    %382 = vmatpush1.xpose.msra.mxu0 0.0
    %383 = vmatprep.subr.mxu0 0.0
    %384 = vmatpush1.xpose.msra.mxu0 0.0
    %385 = vmatprep.subr.mxu0 0.0
    %386 = vmatpush1.xpose.msra.mxu0 0.0
    %387 = vmatprep.subr.mxu0 0.0
    %388 = vmatpush1.xpose.msra.mxu0 0.0
    %389 = vmatprep.subr.mxu0 0.0
    %390 = vmatpush1.xpose.msra.mxu0 0.0
    %391 = vmatprep.subr.mxu0 0.0
    %392 = vmatpush1.xpose.msra.mxu0 0.0
    %393 = vmatprep.subr.mxu0 0.0
    %394 = vmatpush1.xpose.msra.mxu0 0.0
    %395 = vmatprep.subr.mxu0 0.0
    %396 = vmatpush1.xpose.msra.mxu0 0.0
    %397 = vmatprep.subr.mxu0 0.0
    %398 = vmatpush1.xpose.msra.mxu0 0.0
    %399 = vmatprep.subr.mxu0 0.0
    %400 = vmatpush1.xpose.msra.mxu0 0.0
    %401 = vmatprep.subr.mxu0 0.0
    %402 = vmatpush1.xpose.msra.mxu0 0.0
    %403 = vmatprep.subr.mxu0 0.0
    %404 = vmatpush1.xpose.msra.mxu0 0.0
    %405 = vmatprep.subr.mxu0 0.0
    %406 = vmatpush1.xpose.msra.mxu0 0.0
    %407 = vmatprep.subr.mxu0 0.0
    %408 = vmatpush1.xpose.msra.mxu0 0.0
    %409 = vmatprep.subr.mxu0 0.0
    %410 = vmatpush1.xpose.msra.mxu0 0.0
    %411 = vmatprep.subr.mxu0 0.0
    %412 = vmatpush1.xpose.msra.mxu0 0.0
    %413 = vmatprep.subr.mxu0 0.0
    %414 = vmatpush1.xpose.msra.mxu0 0.0
    %415 = vmatprep.subr.mxu0 0.0
    %416 = vmatpush1.xpose.msra.mxu0 0.0
    %417 = vmatprep.subr.mxu0 0.0
    %418 = vmatpush1.xpose.msra.mxu0 0.0
    %419 = vmatprep.subr.mxu0 0.0
    %420 = vmatpush1.xpose.msra.mxu0 0.0
    %421 = vmatprep.subr.mxu0 0.0
    %422 = vmatpush1.xpose.msra.mxu0 0.0
    %423 = vmatprep.subr.mxu0 0.0
    %424 = vmatpush1.xpose.msra.mxu0 0.0
    %425 = vmatprep.subr.mxu0 0.0
    %426 = vmatpush1.xpose.msra.mxu0 0.0
    %427 = vmatprep.subr.mxu0 0.0
    %428 = vmatpush1.xpose.msra.mxu0 0.0
    %429 = vmatprep.subr.mxu0 0.0
    %430 = vmatpush1.xpose.msra.mxu0 0.0
    %431 = vmatprep.subr.mxu0 0.0
    %432 = vmatpush1.xpose.msra.mxu0 0.0
    %433 = vmatprep.subr.mxu0 0.0
    %434 = vmatpush1.xpose.msra.mxu0 0.0
    %435 = vmatprep.subr.mxu0 0.0
    %436 = vmatpush1.xpose.msra.mxu0 0.0
    %437 = vmatprep.subr.mxu0 0.0
    %438 = vmatpush1.xpose.msra.mxu0 0.0
    %439 = vmatprep.mubr.f32.mxu0 0.0
    %440 = vmatmul.mubr.f32.gmra.mrb[0].mxu0 %v367
    %v441 = vpop.f32.mrb[0].mxu0
    %v442 = vadd.f32 %v31, %v441
    %v443 = vpop.f32.mrb[0].mxu0
    %444 = vmatprep.mubr.f32.mxu0 0.0
    %445 = vmatmul.mubr.f32.gmra.mrb[0].mxu0 %v369
    %v446 = vpop.f32.mrb[0].mxu0
    %v447 = vadd.f32 %v32, %v446
    %v448 = vpop.f32.mrb[0].mxu0
    %449 = vdwg.mxu0
    %452 = vrot.lane.b32.xlu0 %v202, 120
    %v453 = vpop.permute.xlu0 %452
    %454 = vrot.lane.b32.xlu0 %v207, 120
    %v455 = vpop.permute.xlu0 %454
    %v456 = vsel %vm366, %v202, 0
    %v458 = vsel %vm366, %v207, 0
    %v460 = vsel %vm366, %v453, 0
    %v462 = vsel %vm366, %v455, 0
    %464 = vmatprep.subr.mxu0 0.0
    %465 = vmatpush1.xpose.msra.mxu0 %v460
    %466 = vmatprep.subr.mxu0 0.0
    %467 = vmatpush1.xpose.msra.mxu0 %v462
    %468 = vmatprep.subr.mxu0 0.0
    %469 = vmatpush1.xpose.msra.mxu0 0.0
    %470 = vmatprep.subr.mxu0 0.0
    %471 = vmatpush1.xpose.msra.mxu0 0.0
    %472 = vmatprep.subr.mxu0 0.0
    %473 = vmatpush1.xpose.msra.mxu0 0.0
    %474 = vmatprep.subr.mxu0 0.0
    %475 = vmatpush1.xpose.msra.mxu0 0.0
    %476 = vmatprep.subr.mxu0 0.0
    %477 = vmatpush1.xpose.msra.mxu0 0.0
    %478 = vmatprep.subr.mxu0 0.0
    %479 = vmatpush1.xpose.msra.mxu0 0.0
    %480 = vmatprep.subr.mxu0 0.0
    %481 = vmatpush1.xpose.msra.mxu0 0.0
    %482 = vmatprep.subr.mxu0 0.0
    %483 = vmatpush1.xpose.msra.mxu0 0.0
    %484 = vmatprep.subr.mxu0 0.0
    %485 = vmatpush1.xpose.msra.mxu0 0.0
    %486 = vmatprep.subr.mxu0 0.0
    %487 = vmatpush1.xpose.msra.mxu0 0.0
    %488 = vmatprep.subr.mxu0 0.0
    %489 = vmatpush1.xpose.msra.mxu0 0.0
    %490 = vmatprep.subr.mxu0 0.0
    %491 = vmatpush1.xpose.msra.mxu0 0.0
    %492 = vmatprep.subr.mxu0 0.0
    %493 = vmatpush1.xpose.msra.mxu0 0.0
    %494 = vmatprep.subr.mxu0 0.0
    %495 = vmatpush1.xpose.msra.mxu0 0.0
    %496 = vmatprep.subr.mxu0 0.0
    %497 = vmatpush1.xpose.msra.mxu0 0.0
    %498 = vmatprep.subr.mxu0 0.0
    %499 = vmatpush1.xpose.msra.mxu0 0.0
    %500 = vmatprep.subr.mxu0 0.0
    %501 = vmatpush1.xpose.msra.mxu0 0.0
    %502 = vmatprep.subr.mxu0 0.0
    %503 = vmatpush1.xpose.msra.mxu0 0.0
    %504 = vmatprep.subr.mxu0 0.0
    %505 = vmatpush1.xpose.msra.mxu0 0.0
    %506 = vmatprep.subr.mxu0 0.0
    %507 = vmatpush1.xpose.msra.mxu0 0.0
    %508 = vmatprep.subr.mxu0 0.0
    %509 = vmatpush1.xpose.msra.mxu0 0.0
    %510 = vmatprep.subr.mxu0 0.0
    %511 = vmatpush1.xpose.msra.mxu0 0.0
    %512 = vmatprep.subr.mxu0 0.0
    %513 = vmatpush1.xpose.msra.mxu0 0.0
    %514 = vmatprep.subr.mxu0 0.0
    %515 = vmatpush1.xpose.msra.mxu0 0.0
    %516 = vmatprep.subr.mxu0 0.0
    %517 = vmatpush1.xpose.msra.mxu0 0.0
    %518 = vmatprep.subr.mxu0 0.0
    %519 = vmatpush1.xpose.msra.mxu0 0.0
    %520 = vmatprep.subr.mxu0 0.0
    %521 = vmatpush1.xpose.msra.mxu0 0.0
    %522 = vmatprep.subr.mxu0 0.0
    %523 = vmatpush1.xpose.msra.mxu0 0.0
    %524 = vmatprep.subr.mxu0 0.0
    %525 = vmatpush1.xpose.msra.mxu0 0.0
    %526 = vmatprep.subr.mxu0 0.0
    %527 = vmatpush1.xpose.msra.mxu0 0.0
    %528 = vmatprep.mubr.f32.mxu0 0.0
    %529 = vmatmul.mubr.f32.gmra.mrb[0].mxu0 %v456
    %v530 = vpop.f32.mrb[0].mxu0
    %v531 = vadd.f32 %v31, %v530
    %v532 = vpop.f32.mrb[0].mxu0
    %533 = vmatprep.mubr.f32.mxu0 0.0
    %534 = vmatmul.mubr.f32.gmra.mrb[0].mxu0 %v458
    %v535 = vpop.f32.mrb[0].mxu0
    %v536 = vadd.f32 %v32, %v535
    %v537 = vpop.f32.mrb[0].mxu0
    %538 = vdwg.mxu0
    %541 = vrot.lane.b32.xlu0 %v277, 120
    %v542 = vpop.permute.xlu0 %541
    %543 = vrot.lane.b32.xlu0 %v282, 120
    %v544 = vpop.permute.xlu0 %543
    %v545 = vsel %vm366, %v277, 0
    %v547 = vsel %vm366, %v282, 0
    %v549 = vsel %vm366, %v542, 0
    %v551 = vsel %vm366, %v544, 0
    %553 = vmatprep.subr.mxu0 0.0
    %554 = vmatpush1.xpose.msra.mxu0 %v549
    %555 = vmatprep.subr.mxu0 0.0
    %556 = vmatpush1.xpose.msra.mxu0 %v551
    %557 = vmatprep.subr.mxu0 0.0
    %558 = vmatpush1.xpose.msra.mxu0 0.0
    %559 = vmatprep.subr.mxu0 0.0
    %560 = vmatpush1.xpose.msra.mxu0 0.0
    %561 = vmatprep.subr.mxu0 0.0
    %562 = vmatpush1.xpose.msra.mxu0 0.0
    %563 = vmatprep.subr.mxu0 0.0
    %564 = vmatpush1.xpose.msra.mxu0 0.0
    %565 = vmatprep.subr.mxu0 0.0
    %566 = vmatpush1.xpose.msra.mxu0 0.0
    %567 = vmatprep.subr.mxu0 0.0
    %568 = vmatpush1.xpose.msra.mxu0 0.0
    %569 = vmatprep.subr.mxu0 0.0
    %570 = vmatpush1.xpose.msra.mxu0 0.0
    %571 = vmatprep.subr.mxu0 0.0
    %572 = vmatpush1.xpose.msra.mxu0 0.0
    %573 = vmatprep.subr.mxu0 0.0
    %574 = vmatpush1.xpose.msra.mxu0 0.0
    %575 = vmatprep.subr.mxu0 0.0
    %576 = vmatpush1.xpose.msra.mxu0 0.0
    %577 = vmatprep.subr.mxu0 0.0
    %578 = vmatpush1.xpose.msra.mxu0 0.0
    %579 = vmatprep.subr.mxu0 0.0
    %580 = vmatpush1.xpose.msra.mxu0 0.0
    %581 = vmatprep.subr.mxu0 0.0
    %582 = vmatpush1.xpose.msra.mxu0 0.0
    %583 = vmatprep.subr.mxu0 0.0
    %584 = vmatpush1.xpose.msra.mxu0 0.0
    %585 = vmatprep.subr.mxu0 0.0
    %586 = vmatpush1.xpose.msra.mxu0 0.0
    %587 = vmatprep.subr.mxu0 0.0
    %588 = vmatpush1.xpose.msra.mxu0 0.0
    %589 = vmatprep.subr.mxu0 0.0
    %590 = vmatpush1.xpose.msra.mxu0 0.0
    %591 = vmatprep.subr.mxu0 0.0
    %592 = vmatpush1.xpose.msra.mxu0 0.0
    %593 = vmatprep.subr.mxu0 0.0
    %594 = vmatpush1.xpose.msra.mxu0 0.0
    %595 = vmatprep.subr.mxu0 0.0
    %596 = vmatpush1.xpose.msra.mxu0 0.0
    %597 = vmatprep.subr.mxu0 0.0
    %598 = vmatpush1.xpose.msra.mxu0 0.0
    %599 = vmatprep.subr.mxu0 0.0
    %600 = vmatpush1.xpose.msra.mxu0 0.0
    %601 = vmatprep.subr.mxu0 0.0
    %602 = vmatpush1.xpose.msra.mxu0 0.0
    %603 = vmatprep.subr.mxu0 0.0
    %604 = vmatpush1.xpose.msra.mxu0 0.0
    %605 = vmatprep.subr.mxu0 0.0
    %606 = vmatpush1.xpose.msra.mxu0 0.0
    %607 = vmatprep.subr.mxu0 0.0
    %608 = vmatpush1.xpose.msra.mxu0 0.0
    %609 = vmatprep.subr.mxu0 0.0
    %610 = vmatpush1.xpose.msra.mxu0 0.0
    %611 = vmatprep.subr.mxu0 0.0
    %612 = vmatpush1.xpose.msra.mxu0 0.0
    %613 = vmatprep.subr.mxu0 0.0
    %614 = vmatpush1.xpose.msra.mxu0 0.0
    %615 = vmatprep.subr.mxu0 0.0
    %616 = vmatpush1.xpose.msra.mxu0 0.0
    %617 = vmatprep.mubr.f32.mxu0 0.0
    %618 = vmatmul.mubr.f32.gmra.mrb[0].mxu0 %v545
    %v619 = vpop.f32.mrb[0].mxu0
    %v620 = vadd.f32 %v31, %v619
    %v621 = vpop.f32.mrb[0].mxu0
    %622 = vmatprep.mubr.f32.mxu0 0.0
    %623 = vmatmul.mubr.f32.gmra.mrb[0].mxu0 %v547
    %v624 = vpop.f32.mrb[0].mxu0
    %v625 = vadd.f32 %v32, %v624
    %v626 = vpop.f32.mrb[0].mxu0
    %627 = vdwg.mxu0
    %630 = vrot.lane.b32.xlu0 %v352, 120
    %v631 = vpop.permute.xlu0 %630
    %632 = vrot.lane.b32.xlu0 %v357, 120
    %v633 = vpop.permute.xlu0 %632
    %v634 = vsel %vm366, %v352, 0
    %v636 = vsel %vm366, %v357, 0
    %v638 = vsel %vm366, %v631, 0
    %v640 = vsel %vm366, %v633, 0
    %642 = vmatprep.subr.mxu0 0.0
    %643 = vmatpush1.xpose.msra.mxu0 %v638
    %644 = vmatprep.subr.mxu0 0.0
    %645 = vmatpush1.xpose.msra.mxu0 %v640
    %646 = vmatprep.subr.mxu0 0.0
    %647 = vmatpush1.xpose.msra.mxu0 0.0
    %648 = vmatprep.subr.mxu0 0.0
    %649 = vmatpush1.xpose.msra.mxu0 0.0
    %650 = vmatprep.subr.mxu0 0.0
    %651 = vmatpush1.xpose.msra.mxu0 0.0
    %652 = vmatprep.subr.mxu0 0.0
    %653 = vmatpush1.xpose.msra.mxu0 0.0
    %654 = vmatprep.subr.mxu0 0.0
    %655 = vmatpush1.xpose.msra.mxu0 0.0
    %656 = vmatprep.subr.mxu0 0.0
    %657 = vmatpush1.xpose.msra.mxu0 0.0
    %658 = vmatprep.subr.mxu0 0.0
    %659 = vmatpush1.xpose.msra.mxu0 0.0
    %660 = vmatprep.subr.mxu0 0.0
    %661 = vmatpush1.xpose.msra.mxu0 0.0
    %662 = vmatprep.subr.mxu0 0.0
    %663 = vmatpush1.xpose.msra.mxu0 0.0
    %664 = vmatprep.subr.mxu0 0.0
    %665 = vmatpush1.xpose.msra.mxu0 0.0
    %666 = vmatprep.subr.mxu0 0.0
    %667 = vmatpush1.xpose.msra.mxu0 0.0
    %668 = vmatprep.subr.mxu0 0.0
    %669 = vmatpush1.xpose.msra.mxu0 0.0
    %670 = vmatprep.subr.mxu0 0.0
    %671 = vmatpush1.xpose.msra.mxu0 0.0
    %672 = vmatprep.subr.mxu0 0.0
    %673 = vmatpush1.xpose.msra.mxu0 0.0
    %674 = vmatprep.subr.mxu0 0.0
    %675 = vmatpush1.xpose.msra.mxu0 0.0
    %676 = vmatprep.subr.mxu0 0.0
    %677 = vmatpush1.xpose.msra.mxu0 0.0
    %678 = vmatprep.subr.mxu0 0.0
    %679 = vmatpush1.xpose.msra.mxu0 0.0
    %680 = vmatprep.subr.mxu0 0.0
    %681 = vmatpush1.xpose.msra.mxu0 0.0
    %682 = vmatprep.subr.mxu0 0.0
    %683 = vmatpush1.xpose.msra.mxu0 0.0
    %684 = vmatprep.subr.mxu0 0.0
    %685 = vmatpush1.xpose.msra.mxu0 0.0
    %686 = vmatprep.subr.mxu0 0.0
    %687 = vmatpush1.xpose.msra.mxu0 0.0
    %688 = vmatprep.subr.mxu0 0.0
    %689 = vmatpush1.xpose.msra.mxu0 0.0
    %690 = vmatprep.subr.mxu0 0.0
    %691 = vmatpush1.xpose.msra.mxu0 0.0
    %692 = vmatprep.subr.mxu0 0.0
    %693 = vmatpush1.xpose.msra.mxu0 0.0
    %694 = vmatprep.subr.mxu0 0.0
    %695 = vmatpush1.xpose.msra.mxu0 0.0
    %696 = vmatprep.subr.mxu0 0.0
    %697 = vmatpush1.xpose.msra.mxu0 0.0
    %698 = vmatprep.subr.mxu0 0.0
    %699 = vmatpush1.xpose.msra.mxu0 0.0
    %700 = vmatprep.subr.mxu0 0.0
    %701 = vmatpush1.xpose.msra.mxu0 0.0
    %702 = vmatprep.subr.mxu0 0.0
    %703 = vmatpush1.xpose.msra.mxu0 0.0
    %704 = vmatprep.subr.mxu0 0.0
    %705 = vmatpush1.xpose.msra.mxu0 0.0
    %706 = vmatprep.mubr.f32.mxu0 0.0
    %707 = vmatmul.mubr.f32.gmra.mrb[0].mxu0 %v634
    %v708 = vpop.f32.mrb[0].mxu0
    %v709 = vadd.f32 %v31, %v708
    %v710 = vpop.f32.mrb[0].mxu0
    %711 = vmatprep.mubr.f32.mxu0 0.0
    %712 = vmatmul.mubr.f32.gmra.mrb[0].mxu0 %v636
    %v713 = vpop.f32.mrb[0].mxu0
    %v714 = vadd.f32 %v32, %v713
    %v715 = vpop.f32.mrb[0].mxu0
    %716 = vdwg.mxu0
    %vm717 = vcmask 130048
    %v718 = vsel %vm717, %v442, -inf
    %719 = vmax.xlane.f32.xlu0 %v718
    %v720 = vpop.xlane.xlu0 %719
    %v721 = vsel %vm717, %v447, -inf
    %722 = vmax.xlane.f32.xlu0 %v721
    %v723 = vpop.xlane.xlu0 %722
    %v724 = vsel %vm717, %v531, -inf
    %725 = vmax.xlane.f32.xlu0 %v724
    %v726 = vpop.xlane.xlu0 %725
    %v727 = vsel %vm717, %v536, -inf
    %728 = vmax.xlane.f32.xlu0 %v727
    %v729 = vpop.xlane.xlu0 %728
    %v730 = vsel %vm717, %v620, -inf
    %731 = vmax.xlane.f32.xlu0 %v730
    %v732 = vpop.xlane.xlu0 %731
    %v733 = vsel %vm717, %v625, -inf
    %734 = vmax.xlane.f32.xlu0 %v733
    %v735 = vpop.xlane.xlu0 %734
    %v736 = vsel %vm717, %v709, -inf
    %737 = vmax.xlane.f32.xlu0 %v736
    %v738 = vpop.xlane.xlu0 %737
    %v739 = vsel %vm717, %v714, -inf
    %740 = vmax.xlane.f32.xlu0 %v739
    %v741 = vpop.xlane.xlu0 %740
    %v742 = vsub.f32 %v442, %v720
    %v743 = vsub.f32 %v447, %v723
    %v744 = vsub.f32 %v531, %v726
    %v745 = vsub.f32 %v536, %v729
    %v746 = vsub.f32 %v620, %v732
    %v747 = vsub.f32 %v625, %v735
    %v748 = vsub.f32 %v709, %v738
    %v749 = vsub.f32 %v714, %v741
    %v750 = vmul.f32 %v742, 1.442695
    %v751 = vpow.pop %v750
    %v752 = vmul.f32 %v743, 1.442695
    %v753 = vpow.pop %v752
    %v754 = vmul.f32 %v744, 1.442695
    %v755 = vpow.pop %v754
    %v756 = vmul.f32 %v745, 1.442695
    %v757 = vpow.pop %v756
    %v758 = vmul.f32 %v746, 1.442695
    %v759 = vpow.pop %v758
    %v760 = vmul.f32 %v747, 1.442695
    %v761 = vpow.pop %v760
    %v762 = vmul.f32 %v748, 1.442695
    %v763 = vpow.pop %v762
    %v764 = vmul.f32 %v749, 1.442695
    %v765 = vpow.pop %v764
    %v766 = vsel %vm717, %v751, 0.0
    %767 = vadd.xlane.f32.xlu0 %v766
    %v768 = vpop.xlane.xlu0 %767
    %v769 = vsel %vm717, %v753, 0.0
    %770 = vadd.xlane.f32.xlu0 %v769
    %v771 = vpop.xlane.xlu0 %770
    %v772 = vsel %vm717, %v755, 0.0
    %773 = vadd.xlane.f32.xlu0 %v772
    %v774 = vpop.xlane.xlu0 %773
    %v775 = vsel %vm717, %v757, 0.0
    %776 = vadd.xlane.f32.xlu0 %v775
    %v777 = vpop.xlane.xlu0 %776
    %v778 = vsel %vm717, %v759, 0.0
    %779 = vadd.xlane.f32.xlu0 %v778
    %v780 = vpop.xlane.xlu0 %779
    %v781 = vsel %vm717, %v761, 0.0
    %782 = vadd.xlane.f32.xlu0 %v781
    %v783 = vpop.xlane.xlu0 %782
    %v784 = vsel %vm717, %v763, 0.0
    %785 = vadd.xlane.f32.xlu0 %v784
    %v786 = vpop.xlane.xlu0 %785
    %v787 = vsel %vm717, %v765, 0.0
    %788 = vadd.xlane.f32.xlu0 %v787
    %v789 = vpop.xlane.xlu0 %788
    %v790 = vrcp.pop %v768
    %v791 = vmul.f32 1.0, %v790
    %v792 = vrcp.pop %v771
    %v793 = vmul.f32 1.0, %v792
    %v794 = vrcp.pop %v774
    %v795 = vmul.f32 1.0, %v794
    %v796 = vrcp.pop %v777
    %v797 = vmul.f32 1.0, %v796
    %v798 = vrcp.pop %v780
    %v799 = vmul.f32 1.0, %v798
    %v800 = vrcp.pop %v783
    %v801 = vmul.f32 1.0, %v800
    %v802 = vrcp.pop %v786
    %v803 = vmul.f32 1.0, %v802
    %v804 = vrcp.pop %v789
    %v805 = vmul.f32 1.0, %v804
    %v806 = vmul.f32 %v751, %v791
    %v807 = vmul.f32 %v753, %v793
    %v808 = vmul.f32 %v755, %v795
    %v809 = vmul.f32 %v757, %v797
    %v810 = vmul.f32 %v759, %v799
    %v811 = vmul.f32 %v761, %v801
    %v812 = vmul.f32 %v763, %v803
    %v813 = vmul.f32 %v765, %v805
    %814 = vrot.lane.b32.xlu0 %v127, 112
    %v815 = vpop.permute.xlu0 %814
    %816 = vrot.lane.b32.xlu0 %v132, 112
    %v817 = vpop.permute.xlu0 %816
    %v821 = vsel %vm717, %v806, 0
    %v824 = vsel %vm717, %v807, 0
    %826 = vmatprep.subr.mxu0 0.0
    %827 = vmatpush1.msra.mxu0 %v815
    %828 = vmatprep.subr.mxu0 0.0
    %829 = vmatpush1.msra.mxu0 %v817
    %830 = vmatprep.subr.mxu0 0.0
    %831 = vmatpush1.msra.mxu0 0.0
    %832 = vmatprep.subr.mxu0 0.0
    %833 = vmatpush1.msra.mxu0 0.0
    %834 = vmatprep.subr.mxu0 0.0
    %835 = vmatpush1.msra.mxu0 0.0
    %836 = vmatprep.subr.mxu0 0.0
    %837 = vmatpush1.msra.mxu0 0.0
    %838 = vmatprep.subr.mxu0 0.0
    %839 = vmatpush1.msra.mxu0 0.0
    %840 = vmatprep.subr.mxu0 0.0
    %841 = vmatpush1.msra.mxu0 0.0
    %842 = vmatprep.subr.mxu0 0.0
    %843 = vmatpush1.msra.mxu0 0.0
    %844 = vmatprep.subr.mxu0 0.0
    %845 = vmatpush1.msra.mxu0 0.0
    %846 = vmatprep.subr.mxu0 0.0
    %847 = vmatpush1.msra.mxu0 0.0
    %848 = vmatprep.subr.mxu0 0.0
    %849 = vmatpush1.msra.mxu0 0.0
    %850 = vmatprep.subr.mxu0 0.0
    %851 = vmatpush1.msra.mxu0 0.0
    %852 = vmatprep.subr.mxu0 0.0
    %853 = vmatpush1.msra.mxu0 0.0
    %854 = vmatprep.subr.mxu0 0.0
    %855 = vmatpush1.msra.mxu0 0.0
    %856 = vmatprep.subr.mxu0 0.0
    %857 = vmatpush1.msra.mxu0 0.0
    %858 = vmatprep.subr.mxu0 0.0
    %859 = vmatpush1.msra.mxu0 0.0
    %860 = vmatprep.subr.mxu0 0.0
    %861 = vmatpush1.msra.mxu0 0.0
    %862 = vmatprep.subr.mxu0 0.0
    %863 = vmatpush1.msra.mxu0 0.0
    %864 = vmatprep.subr.mxu0 0.0
    %865 = vmatpush1.msra.mxu0 0.0
    %866 = vmatprep.subr.mxu0 0.0
    %867 = vmatpush1.msra.mxu0 0.0
    %868 = vmatprep.subr.mxu0 0.0
    %869 = vmatpush1.msra.mxu0 0.0
    %870 = vmatprep.subr.mxu0 0.0
    %871 = vmatpush1.msra.mxu0 0.0
    %872 = vmatprep.subr.mxu0 0.0
    %873 = vmatpush1.msra.mxu0 0.0
    %874 = vmatprep.subr.mxu0 0.0
    %875 = vmatpush1.msra.mxu0 0.0
    %876 = vmatprep.subr.mxu0 0.0
    %877 = vmatpush1.msra.mxu0 0.0
    %878 = vmatprep.subr.mxu0 0.0
    %879 = vmatpush1.msra.mxu0 0.0
    %880 = vmatprep.subr.mxu0 0.0
    %881 = vmatpush1.msra.mxu0 0.0
    %882 = vmatprep.subr.mxu0 0.0
    %883 = vmatpush1.msra.mxu0 0.0
    %884 = vmatprep.subr.mxu0 0.0
    %885 = vmatpush1.msra.mxu0 0.0
    %886 = vmatprep.subr.mxu0 0.0
    %887 = vmatpush1.msra.mxu0 0.0
    %888 = vmatprep.subr.mxu0 0.0
    %889 = vmatpush1.msra.mxu0 0.0
    %890 = vmatprep.mubr.f32.mxu0 0.0
    %891 = vmatmul.mubr.f32.gmra.mrb[0].mxu0 %v821
    %v892 = vpop.f32.mrb[0].mxu0
    %v893 = vadd.f32 0.0, %v892
    %v894 = vpop.f32.mrb[0].mxu0
    %895 = vmatprep.mubr.f32.mxu0 0.0
    %896 = vmatmul.mubr.f32.gmra.mrb[0].mxu0 %v824
    %v897 = vpop.f32.mrb[0].mxu0
    %v898 = vadd.f32 0.0, %v897
    %v899 = vpop.f32.mrb[0].mxu0
    %900 = vdwg.mxu0
    %901 = vrot.lane.b32.xlu0 %v202, 112
    %v902 = vpop.permute.xlu0 %901
    %903 = vrot.lane.b32.xlu0 %v207, 112
    %v904 = vpop.permute.xlu0 %903
    %v908 = vsel %vm717, %v808, 0
    %v911 = vsel %vm717, %v809, 0
    %913 = vmatprep.subr.mxu0 0.0
    %914 = vmatpush1.msra.mxu0 %v902
    %915 = vmatprep.subr.mxu0 0.0
    %916 = vmatpush1.msra.mxu0 %v904
    %917 = vmatprep.subr.mxu0 0.0
    %918 = vmatpush1.msra.mxu0 0.0
    %919 = vmatprep.subr.mxu0 0.0
    %920 = vmatpush1.msra.mxu0 0.0
    %921 = vmatprep.subr.mxu0 0.0
    %922 = vmatpush1.msra.mxu0 0.0
    %923 = vmatprep.subr.mxu0 0.0
    %924 = vmatpush1.msra.mxu0 0.0
    %925 = vmatprep.subr.mxu0 0.0
    %926 = vmatpush1.msra.mxu0 0.0
    %927 = vmatprep.subr.mxu0 0.0
    %928 = vmatpush1.msra.mxu0 0.0
    %929 = vmatprep.subr.mxu0 0.0
    %930 = vmatpush1.msra.mxu0 0.0
    %931 = vmatprep.subr.mxu0 0.0
    %932 = vmatpush1.msra.mxu0 0.0
    %933 = vmatprep.subr.mxu0 0.0
    %934 = vmatpush1.msra.mxu0 0.0
    %935 = vmatprep.subr.mxu0 0.0
    %936 = vmatpush1.msra.mxu0 0.0
    %937 = vmatprep.subr.mxu0 0.0
    %938 = vmatpush1.msra.mxu0 0.0
    %939 = vmatprep.subr.mxu0 0.0
    %940 = vmatpush1.msra.mxu0 0.0
    %941 = vmatprep.subr.mxu0 0.0
    %942 = vmatpush1.msra.mxu0 0.0
    %943 = vmatprep.subr.mxu0 0.0
    %944 = vmatpush1.msra.mxu0 0.0
    %945 = vmatprep.subr.mxu0 0.0
    %946 = vmatpush1.msra.mxu0 0.0
    %947 = vmatprep.subr.mxu0 0.0
    %948 = vmatpush1.msra.mxu0 0.0
    %949 = vmatprep.subr.mxu0 0.0
    %950 = vmatpush1.msra.mxu0 0.0
    %951 = vmatprep.subr.mxu0 0.0
    %952 = vmatpush1.msra.mxu0 0.0
    %953 = vmatprep.subr.mxu0 0.0
    %954 = vmatpush1.msra.mxu0 0.0
    %955 = vmatprep.subr.mxu0 0.0
    %956 = vmatpush1.msra.mxu0 0.0
    %957 = vmatprep.subr.mxu0 0.0
    %958 = vmatpush1.msra.mxu0 0.0
    %959 = vmatprep.subr.mxu0 0.0
    %960 = vmatpush1.msra.mxu0 0.0
    %961 = vmatprep.subr.mxu0 0.0
    %962 = vmatpush1.msra.mxu0 0.0
    %963 = vmatprep.subr.mxu0 0.0
    %964 = vmatpush1.msra.mxu0 0.0
    %965 = vmatprep.subr.mxu0 0.0
    %966 = vmatpush1.msra.mxu0 0.0
    %967 = vmatprep.subr.mxu0 0.0
    %968 = vmatpush1.msra.mxu0 0.0
    %969 = vmatprep.subr.mxu0 0.0
    %970 = vmatpush1.msra.mxu0 0.0
    %971 = vmatprep.subr.mxu0 0.0
    %972 = vmatpush1.msra.mxu0 0.0
    %973 = vmatprep.subr.mxu0 0.0
    %974 = vmatpush1.msra.mxu0 0.0
    %975 = vmatprep.subr.mxu0 0.0
    %976 = vmatpush1.msra.mxu0 0.0
    %977 = vmatprep.mubr.f32.mxu0 0.0
    %978 = vmatmul.mubr.f32.gmra.mrb[0].mxu0 %v908
    %v979 = vpop.f32.mrb[0].mxu0
    %v980 = vadd.f32 0.0, %v979
    %v981 = vpop.f32.mrb[0].mxu0
    %982 = vmatprep.mubr.f32.mxu0 0.0
    %983 = vmatmul.mubr.f32.gmra.mrb[0].mxu0 %v911
    %v984 = vpop.f32.mrb[0].mxu0
    %v985 = vadd.f32 0.0, %v984
    %v986 = vpop.f32.mrb[0].mxu0
    %987 = vdwg.mxu0
    %988 = vrot.lane.b32.xlu0 %v277, 112
    %v989 = vpop.permute.xlu0 %988
    %990 = vrot.lane.b32.xlu0 %v282, 112
    %v991 = vpop.permute.xlu0 %990
    %v995 = vsel %vm717, %v810, 0
    %v998 = vsel %vm717, %v811, 0
    %1000 = vmatprep.subr.mxu0 0.0
    %1001 = vmatpush1.msra.mxu0 %v989
    %1002 = vmatprep.subr.mxu0 0.0
    %1003 = vmatpush1.msra.mxu0 %v991
    %1004 = vmatprep.subr.mxu0 0.0
    %1005 = vmatpush1.msra.mxu0 0.0
    %1006 = vmatprep.subr.mxu0 0.0
    %1007 = vmatpush1.msra.mxu0 0.0
    %1008 = vmatprep.subr.mxu0 0.0
    %1009 = vmatpush1.msra.mxu0 0.0
    %1010 = vmatprep.subr.mxu0 0.0
    %1011 = vmatpush1.msra.mxu0 0.0
    %1012 = vmatprep.subr.mxu0 0.0
    %1013 = vmatpush1.msra.mxu0 0.0
    %1014 = vmatprep.subr.mxu0 0.0
    %1015 = vmatpush1.msra.mxu0 0.0
    %1016 = vmatprep.subr.mxu0 0.0
    %1017 = vmatpush1.msra.mxu0 0.0
    %1018 = vmatprep.subr.mxu0 0.0
    %1019 = vmatpush1.msra.mxu0 0.0
    %1020 = vmatprep.subr.mxu0 0.0
    %1021 = vmatpush1.msra.mxu0 0.0
    %1022 = vmatprep.subr.mxu0 0.0
    %1023 = vmatpush1.msra.mxu0 0.0
    %1024 = vmatprep.subr.mxu0 0.0
    %1025 = vmatpush1.msra.mxu0 0.0
    %1026 = vmatprep.subr.mxu0 0.0
    %1027 = vmatpush1.msra.mxu0 0.0
    %1028 = vmatprep.subr.mxu0 0.0
    %1029 = vmatpush1.msra.mxu0 0.0
    %1030 = vmatprep.subr.mxu0 0.0
    %1031 = vmatpush1.msra.mxu0 0.0
    %1032 = vmatprep.subr.mxu0 0.0
    %1033 = vmatpush1.msra.mxu0 0.0
    %1034 = vmatprep.subr.mxu0 0.0
    %1035 = vmatpush1.msra.mxu0 0.0
    %1036 = vmatprep.subr.mxu0 0.0
    %1037 = vmatpush1.msra.mxu0 0.0
    %1038 = vmatprep.subr.mxu0 0.0
    %1039 = vmatpush1.msra.mxu0 0.0
    %1040 = vmatprep.subr.mxu0 0.0
    %1041 = vmatpush1.msra.mxu0 0.0
    %1042 = vmatprep.subr.mxu0 0.0
    %1043 = vmatpush1.msra.mxu0 0.0
    %1044 = vmatprep.subr.mxu0 0.0
    %1045 = vmatpush1.msra.mxu0 0.0
    %1046 = vmatprep.subr.mxu0 0.0
    %1047 = vmatpush1.msra.mxu0 0.0
    %1048 = vmatprep.subr.mxu0 0.0
    %1049 = vmatpush1.msra.mxu0 0.0
    %1050 = vmatprep.subr.mxu0 0.0
    %1051 = vmatpush1.msra.mxu0 0.0
    %1052 = vmatprep.subr.mxu0 0.0
    %1053 = vmatpush1.msra.mxu0 0.0
    %1054 = vmatprep.subr.mxu0 0.0
    %1055 = vmatpush1.msra.mxu0 0.0
    %1056 = vmatprep.subr.mxu0 0.0
    %1057 = vmatpush1.msra.mxu0 0.0
    %1058 = vmatprep.subr.mxu0 0.0
    %1059 = vmatpush1.msra.mxu0 0.0
    %1060 = vmatprep.subr.mxu0 0.0
    %1061 = vmatpush1.msra.mxu0 0.0
    %1062 = vmatprep.subr.mxu0 0.0
    %1063 = vmatpush1.msra.mxu0 0.0
    %1064 = vmatprep.mubr.f32.mxu0 0.0
    %1065 = vmatmul.mubr.f32.gmra.mrb[0].mxu0 %v995
    %v1066 = vpop.f32.mrb[0].mxu0
    %v1067 = vadd.f32 0.0, %v1066
    %v1068 = vpop.f32.mrb[0].mxu0
    %1069 = vmatprep.mubr.f32.mxu0 0.0
    %1070 = vmatmul.mubr.f32.gmra.mrb[0].mxu0 %v998
    %v1071 = vpop.f32.mrb[0].mxu0
    %v1072 = vadd.f32 0.0, %v1071
    %v1073 = vpop.f32.mrb[0].mxu0
    %1074 = vdwg.mxu0
    %1075 = vrot.lane.b32.xlu0 %v352, 112
    %v1076 = vpop.permute.xlu0 %1075
    %1077 = vrot.lane.b32.xlu0 %v357, 112
    %v1078 = vpop.permute.xlu0 %1077
    %v1082 = vsel %vm717, %v812, 0
    %v1085 = vsel %vm717, %v813, 0
    %1087 = vmatprep.subr.mxu0 0.0
    %1088 = vmatpush1.msra.mxu0 %v1076
    %1089 = vmatprep.subr.mxu0 0.0
    %1090 = vmatpush1.msra.mxu0 %v1078
    %1091 = vmatprep.subr.mxu0 0.0
    %1092 = vmatpush1.msra.mxu0 0.0
    %1093 = vmatprep.subr.mxu0 0.0
    %1094 = vmatpush1.msra.mxu0 0.0
    %1095 = vmatprep.subr.mxu0 0.0
    %1096 = vmatpush1.msra.mxu0 0.0
    %1097 = vmatprep.subr.mxu0 0.0
    %1098 = vmatpush1.msra.mxu0 0.0
    %1099 = vmatprep.subr.mxu0 0.0
    %1100 = vmatpush1.msra.mxu0 0.0
    %1101 = vmatprep.subr.mxu0 0.0
    %1102 = vmatpush1.msra.mxu0 0.0
    %1103 = vmatprep.subr.mxu0 0.0
    %1104 = vmatpush1.msra.mxu0 0.0
    %1105 = vmatprep.subr.mxu0 0.0
    %1106 = vmatpush1.msra.mxu0 0.0
    %1107 = vmatprep.subr.mxu0 0.0
    %1108 = vmatpush1.msra.mxu0 0.0
    %1109 = vmatprep.subr.mxu0 0.0
    %1110 = vmatpush1.msra.mxu0 0.0
    %1111 = vmatprep.subr.mxu0 0.0
    %1112 = vmatpush1.msra.mxu0 0.0
    %1113 = vmatprep.subr.mxu0 0.0
    %1114 = vmatpush1.msra.mxu0 0.0
    %1115 = vmatprep.subr.mxu0 0.0
    %1116 = vmatpush1.msra.mxu0 0.0
    %1117 = vmatprep.subr.mxu0 0.0
    %1118 = vmatpush1.msra.mxu0 0.0
    %1119 = vmatprep.subr.mxu0 0.0
    %1120 = vmatpush1.msra.mxu0 0.0
    %1121 = vmatprep.subr.mxu0 0.0
    %1122 = vmatpush1.msra.mxu0 0.0
    %1123 = vmatprep.subr.mxu0 0.0
    %1124 = vmatpush1.msra.mxu0 0.0
    %1125 = vmatprep.subr.mxu0 0.0
    %1126 = vmatpush1.msra.mxu0 0.0
    %1127 = vmatprep.subr.mxu0 0.0
    %1128 = vmatpush1.msra.mxu0 0.0
    %1129 = vmatprep.subr.mxu0 0.0
    %1130 = vmatpush1.msra.mxu0 0.0
    %1131 = vmatprep.subr.mxu0 0.0
    %1132 = vmatpush1.msra.mxu0 0.0
    %1133 = vmatprep.subr.mxu0 0.0
    %1134 = vmatpush1.msra.mxu0 0.0
    %1135 = vmatprep.subr.mxu0 0.0
    %1136 = vmatpush1.msra.mxu0 0.0
    %1137 = vmatprep.subr.mxu0 0.0
    %1138 = vmatpush1.msra.mxu0 0.0
    %1139 = vmatprep.subr.mxu0 0.0
    %1140 = vmatpush1.msra.mxu0 0.0
    %1141 = vmatprep.subr.mxu0 0.0
    %1142 = vmatpush1.msra.mxu0 0.0
    %1143 = vmatprep.subr.mxu0 0.0
    %1144 = vmatpush1.msra.mxu0 0.0
    %1145 = vmatprep.subr.mxu0 0.0
    %1146 = vmatpush1.msra.mxu0 0.0
    %1147 = vmatprep.subr.mxu0 0.0
    %1148 = vmatpush1.msra.mxu0 0.0
    %1149 = vmatprep.subr.mxu0 0.0
    %1150 = vmatpush1.msra.mxu0 0.0
    %1151 = vmatprep.mubr.f32.mxu0 0.0
    %1152 = vmatmul.mubr.f32.gmra.mrb[0].mxu0 %v1082
    %v1153 = vpop.f32.mrb[0].mxu0
    %v1154 = vadd.f32 0.0, %v1153
    %v1155 = vpop.f32.mrb[0].mxu0
    %1156 = vmatprep.mubr.f32.mxu0 0.0
    %1157 = vmatmul.mubr.f32.gmra.mrb[0].mxu0 %v1085
    %v1158 = vpop.f32.mrb[0].mxu0
    %v1159 = vadd.f32 0.0, %v1158
    %v1160 = vpop.f32.mrb[0].mxu0
    %1161 = vdwg.mxu0
    %v1162 = vld [vmem:[#allocation2 + $0x28] sm:$0xff]
    %v1163 = vld [vmem:[#allocation2 + $0x58] sm:$0xff]
    %v1164 = vld [vmem:[#allocation2 + $0x88] sm:$0xff]
    %v1165 = vld [vmem:[#allocation2 + $0xb8] sm:$0xff]
    %v1167 = vsel %vm366, %v893, 0
    %v1170 = vsel %vm366, %v898, 0
    %1172 = vmatprep.subr.mxu0 0.0
    %1173 = vmatpush1.msra.mxu0 %v1162
    %1174 = vmatprep.subr.mxu0 0.0
    %1175 = vmatpush1.msra.mxu0 0.0
    %1176 = vmatprep.subr.mxu0 0.0
    %1177 = vmatpush1.msra.mxu0 0.0
    %1178 = vmatprep.subr.mxu0 0.0
    %1179 = vmatpush1.msra.mxu0 0.0
    %1180 = vmatprep.subr.mxu0 0.0
    %1181 = vmatpush1.msra.mxu0 0.0
    %1182 = vmatprep.subr.mxu0 0.0
    %1183 = vmatpush1.msra.mxu0 0.0
    %1184 = vmatprep.subr.mxu0 0.0
    %1185 = vmatpush1.msra.mxu0 0.0
    %1186 = vmatprep.subr.mxu0 0.0
    %1187 = vmatpush1.msra.mxu0 0.0
    %1188 = vmatprep.subr.mxu0 0.0
    %1189 = vmatpush1.msra.mxu0 0.0
    %1190 = vmatprep.subr.mxu0 0.0
    %1191 = vmatpush1.msra.mxu0 0.0
    %1192 = vmatprep.subr.mxu0 0.0
    %1193 = vmatpush1.msra.mxu0 0.0
    %1194 = vmatprep.subr.mxu0 0.0
    %1195 = vmatpush1.msra.mxu0 0.0
    %1196 = vmatprep.subr.mxu0 0.0
    %1197 = vmatpush1.msra.mxu0 0.0
    %1198 = vmatprep.subr.mxu0 0.0
    %1199 = vmatpush1.msra.mxu0 0.0
    %1200 = vmatprep.subr.mxu0 0.0
    %1201 = vmatpush1.msra.mxu0 0.0
    %1202 = vmatprep.subr.mxu0 0.0
    %1203 = vmatpush1.msra.mxu0 0.0
    %1204 = vmatprep.subr.mxu0 0.0
    %1205 = vmatpush1.msra.mxu0 0.0
    %1206 = vmatprep.subr.mxu0 0.0
    %1207 = vmatpush1.msra.mxu0 0.0
    %1208 = vmatprep.subr.mxu0 0.0
    %1209 = vmatpush1.msra.mxu0 0.0
    %1210 = vmatprep.subr.mxu0 0.0
    %1211 = vmatpush1.msra.mxu0 0.0
    %1212 = vmatprep.subr.mxu0 0.0
    %1213 = vmatpush1.msra.mxu0 0.0
    %1214 = vmatprep.subr.mxu0 0.0
    %1215 = vmatpush1.msra.mxu0 0.0
    %1216 = vmatprep.subr.mxu0 0.0
    %1217 = vmatpush1.msra.mxu0 0.0
    %1218 = vmatprep.subr.mxu0 0.0
    %1219 = vmatpush1.msra.mxu0 0.0
    %1220 = vmatprep.subr.mxu0 0.0
    %1221 = vmatpush1.msra.mxu0 0.0
    %1222 = vmatprep.subr.mxu0 0.0
    %1223 = vmatpush1.msra.mxu0 0.0
    %1224 = vmatprep.subr.mxu0 0.0
    %1225 = vmatpush1.msra.mxu0 0.0
    %1226 = vmatprep.subr.mxu0 0.0
    %1227 = vmatpush1.msra.mxu0 0.0
    %1228 = vmatprep.subr.mxu0 0.0
    %1229 = vmatpush1.msra.mxu0 0.0
    %1230 = vmatprep.subr.mxu0 0.0
    %1231 = vmatpush1.msra.mxu0 0.0
    %1232 = vmatprep.subr.mxu0 0.0
    %1233 = vmatpush1.msra.mxu0 0.0
    %1234 = vmatprep.subr.mxu0 0.0
    %1235 = vmatpush1.msra.mxu0 0.0
    %1236 = vmatprep.mubr.f32.mxu0 0.0
    %1237 = vmatmul.mubr.f32.gmra.mrb[0].mxu0 %v1167
    %v1238 = vpop.f32.mrb[0].mxu0
    %v1239 = vadd.f32 0.0, %v1238
    %v1240 = vpop.f32.mrb[0].mxu0
    %1241 = vmatprep.mubr.f32.mxu0 0.0
    %1242 = vmatmul.mubr.f32.gmra.mrb[0].mxu0 %v1170
    %v1243 = vpop.f32.mrb[0].mxu0
    %v1244 = vadd.f32 0.0, %v1243
    %v1245 = vpop.f32.mrb[0].mxu0
    %1246 = vdwg.mxu0
    %v1248 = vsel %vm366, %v980, 0
    %v1251 = vsel %vm366, %v985, 0
    %1253 = vmatprep.subr.mxu0 0.0
    %1254 = vmatpush1.msra.mxu0 %v1163
    %1255 = vmatprep.subr.mxu0 0.0
    %1256 = vmatpush1.msra.mxu0 0.0
    %1257 = vmatprep.subr.mxu0 0.0
    %1258 = vmatpush1.msra.mxu0 0.0
    %1259 = vmatprep.subr.mxu0 0.0
    %1260 = vmatpush1.msra.mxu0 0.0
    %1261 = vmatprep.subr.mxu0 0.0
    %1262 = vmatpush1.msra.mxu0 0.0
    %1263 = vmatprep.subr.mxu0 0.0
    %1264 = vmatpush1.msra.mxu0 0.0
    %1265 = vmatprep.subr.mxu0 0.0
    %1266 = vmatpush1.msra.mxu0 0.0
    %1267 = vmatprep.subr.mxu0 0.0
    %1268 = vmatpush1.msra.mxu0 0.0
    %1269 = vmatprep.subr.mxu0 0.0
    %1270 = vmatpush1.msra.mxu0 0.0
    %1271 = vmatprep.subr.mxu0 0.0
    %1272 = vmatpush1.msra.mxu0 0.0
    %1273 = vmatprep.subr.mxu0 0.0
    %1274 = vmatpush1.msra.mxu0 0.0
    %1275 = vmatprep.subr.mxu0 0.0
    %1276 = vmatpush1.msra.mxu0 0.0
    %1277 = vmatprep.subr.mxu0 0.0
    %1278 = vmatpush1.msra.mxu0 0.0
    %1279 = vmatprep.subr.mxu0 0.0
    %1280 = vmatpush1.msra.mxu0 0.0
    %1281 = vmatprep.subr.mxu0 0.0
    %1282 = vmatpush1.msra.mxu0 0.0
    %1283 = vmatprep.subr.mxu0 0.0
    %1284 = vmatpush1.msra.mxu0 0.0
    %1285 = vmatprep.subr.mxu0 0.0
    %1286 = vmatpush1.msra.mxu0 0.0
    %1287 = vmatprep.subr.mxu0 0.0
    %1288 = vmatpush1.msra.mxu0 0.0
    %1289 = vmatprep.subr.mxu0 0.0
    %1290 = vmatpush1.msra.mxu0 0.0
    %1291 = vmatprep.subr.mxu0 0.0
    %1292 = vmatpush1.msra.mxu0 0.0
    %1293 = vmatprep.subr.mxu0 0.0
    %1294 = vmatpush1.msra.mxu0 0.0
    %1295 = vmatprep.subr.mxu0 0.0
    %1296 = vmatpush1.msra.mxu0 0.0
    %1297 = vmatprep.subr.mxu0 0.0
    %1298 = vmatpush1.msra.mxu0 0.0
    %1299 = vmatprep.subr.mxu0 0.0
    %1300 = vmatpush1.msra.mxu0 0.0
    %1301 = vmatprep.subr.mxu0 0.0
    %1302 = vmatpush1.msra.mxu0 0.0
    %1303 = vmatprep.subr.mxu0 0.0
    %1304 = vmatpush1.msra.mxu0 0.0
    %1305 = vmatprep.subr.mxu0 0.0
    %1306 = vmatpush1.msra.mxu0 0.0
    %1307 = vmatprep.subr.mxu0 0.0
    %1308 = vmatpush1.msra.mxu0 0.0
    %1309 = vmatprep.subr.mxu0 0.0
    %1310 = vmatpush1.msra.mxu0 0.0
    %1311 = vmatprep.subr.mxu0 0.0
    %1312 = vmatpush1.msra.mxu0 0.0
    %1313 = vmatprep.subr.mxu0 0.0
    %1314 = vmatpush1.msra.mxu0 0.0
    %1315 = vmatprep.subr.mxu0 0.0
    %1316 = vmatpush1.msra.mxu0 0.0
    %1317 = vmatprep.mubr.f32.mxu0 0.0
    %1318 = vmatmul.mubr.f32.gmra.mrb[0].mxu0 %v1248
    %v1319 = vpop.f32.mrb[0].mxu0
    %v1320 = vadd.f32 0.0, %v1319
    %v1321 = vpop.f32.mrb[0].mxu0
    %1322 = vmatprep.mubr.f32.mxu0 0.0
    %1323 = vmatmul.mubr.f32.gmra.mrb[0].mxu0 %v1251
    %v1324 = vpop.f32.mrb[0].mxu0
    %v1325 = vadd.f32 0.0, %v1324
    %v1326 = vpop.f32.mrb[0].mxu0
    %1327 = vdwg.mxu0
    %v1329 = vsel %vm366, %v1067, 0
    %v1332 = vsel %vm366, %v1072, 0
    %1334 = vmatprep.subr.mxu0 0.0
    %1335 = vmatpush1.msra.mxu0 %v1164
    %1336 = vmatprep.subr.mxu0 0.0
    %1337 = vmatpush1.msra.mxu0 0.0
    %1338 = vmatprep.subr.mxu0 0.0
    %1339 = vmatpush1.msra.mxu0 0.0
    %1340 = vmatprep.subr.mxu0 0.0
    %1341 = vmatpush1.msra.mxu0 0.0
    %1342 = vmatprep.subr.mxu0 0.0
    %1343 = vmatpush1.msra.mxu0 0.0
    %1344 = vmatprep.subr.mxu0 0.0
    %1345 = vmatpush1.msra.mxu0 0.0
    %1346 = vmatprep.subr.mxu0 0.0
    %1347 = vmatpush1.msra.mxu0 0.0
    %1348 = vmatprep.subr.mxu0 0.0
    %1349 = vmatpush1.msra.mxu0 0.0
    %1350 = vmatprep.subr.mxu0 0.0
    %1351 = vmatpush1.msra.mxu0 0.0
    %1352 = vmatprep.subr.mxu0 0.0
    %1353 = vmatpush1.msra.mxu0 0.0
    %1354 = vmatprep.subr.mxu0 0.0
    %1355 = vmatpush1.msra.mxu0 0.0
    %1356 = vmatprep.subr.mxu0 0.0
    %1357 = vmatpush1.msra.mxu0 0.0
    %1358 = vmatprep.subr.mxu0 0.0
    %1359 = vmatpush1.msra.mxu0 0.0
    %1360 = vmatprep.subr.mxu0 0.0
    %1361 = vmatpush1.msra.mxu0 0.0
    %1362 = vmatprep.subr.mxu0 0.0
    %1363 = vmatpush1.msra.mxu0 0.0
    %1364 = vmatprep.subr.mxu0 0.0
    %1365 = vmatpush1.msra.mxu0 0.0
    %1366 = vmatprep.subr.mxu0 0.0
    %1367 = vmatpush1.msra.mxu0 0.0
    %1368 = vmatprep.subr.mxu0 0.0
    %1369 = vmatpush1.msra.mxu0 0.0
    %1370 = vmatprep.subr.mxu0 0.0
    %1371 = vmatpush1.msra.mxu0 0.0
    %1372 = vmatprep.subr.mxu0 0.0
    %1373 = vmatpush1.msra.mxu0 0.0
    %1374 = vmatprep.subr.mxu0 0.0
    %1375 = vmatpush1.msra.mxu0 0.0
    %1376 = vmatprep.subr.mxu0 0.0
    %1377 = vmatpush1.msra.mxu0 0.0
    %1378 = vmatprep.subr.mxu0 0.0
    %1379 = vmatpush1.msra.mxu0 0.0
    %1380 = vmatprep.subr.mxu0 0.0
    %1381 = vmatpush1.msra.mxu0 0.0
    %1382 = vmatprep.subr.mxu0 0.0
    %1383 = vmatpush1.msra.mxu0 0.0
    %1384 = vmatprep.subr.mxu0 0.0
    %1385 = vmatpush1.msra.mxu0 0.0
    %1386 = vmatprep.subr.mxu0 0.0
    %1387 = vmatpush1.msra.mxu0 0.0
    %1388 = vmatprep.subr.mxu0 0.0
    %1389 = vmatpush1.msra.mxu0 0.0
    %1390 = vmatprep.subr.mxu0 0.0
    %1391 = vmatpush1.msra.mxu0 0.0
    %1392 = vmatprep.subr.mxu0 0.0
    %1393 = vmatpush1.msra.mxu0 0.0
    %1394 = vmatprep.subr.mxu0 0.0
    %1395 = vmatpush1.msra.mxu0 0.0
    %1396 = vmatprep.subr.mxu0 0.0
    %1397 = vmatpush1.msra.mxu0 0.0
    %1398 = vmatprep.mubr.f32.mxu0 0.0
    %1399 = vmatmul.mubr.f32.gmra.mrb[0].mxu0 %v1329
    %v1400 = vpop.f32.mrb[0].mxu0
    %v1401 = vadd.f32 0.0, %v1400
    %v1402 = vpop.f32.mrb[0].mxu0
    %1403 = vmatprep.mubr.f32.mxu0 0.0
    %1404 = vmatmul.mubr.f32.gmra.mrb[0].mxu0 %v1332
    %v1405 = vpop.f32.mrb[0].mxu0
    %v1406 = vadd.f32 0.0, %v1405
    %v1407 = vpop.f32.mrb[0].mxu0
    %1408 = vdwg.mxu0
    %v1410 = vsel %vm366, %v1154, 0
    %v1413 = vsel %vm366, %v1159, 0
    %1415 = vmatprep.subr.mxu0 0.0
    %1416 = vmatpush1.msra.mxu0 %v1165
    %1417 = vmatprep.subr.mxu0 0.0
    %1418 = vmatpush1.msra.mxu0 0.0
    %1419 = vmatprep.subr.mxu0 0.0
    %1420 = vmatpush1.msra.mxu0 0.0
    %1421 = vmatprep.subr.mxu0 0.0
    %1422 = vmatpush1.msra.mxu0 0.0
    %1423 = vmatprep.subr.mxu0 0.0
    %1424 = vmatpush1.msra.mxu0 0.0
    %1425 = vmatprep.subr.mxu0 0.0
    %1426 = vmatpush1.msra.mxu0 0.0
    %1427 = vmatprep.subr.mxu0 0.0
    %1428 = vmatpush1.msra.mxu0 0.0
    %1429 = vmatprep.subr.mxu0 0.0
    %1430 = vmatpush1.msra.mxu0 0.0
    %1431 = vmatprep.subr.mxu0 0.0
    %1432 = vmatpush1.msra.mxu0 0.0
    %1433 = vmatprep.subr.mxu0 0.0
    %1434 = vmatpush1.msra.mxu0 0.0
    %1435 = vmatprep.subr.mxu0 0.0
    %1436 = vmatpush1.msra.mxu0 0.0
    %1437 = vmatprep.subr.mxu0 0.0
    %1438 = vmatpush1.msra.mxu0 0.0
    %1439 = vmatprep.subr.mxu0 0.0
    %1440 = vmatpush1.msra.mxu0 0.0
    %1441 = vmatprep.subr.mxu0 0.0
    %1442 = vmatpush1.msra.mxu0 0.0
    %1443 = vmatprep.subr.mxu0 0.0
    %1444 = vmatpush1.msra.mxu0 0.0
    %1445 = vmatprep.subr.mxu0 0.0
    %1446 = vmatpush1.msra.mxu0 0.0
    %1447 = vmatprep.subr.mxu0 0.0
    %1448 = vmatpush1.msra.mxu0 0.0
    %1449 = vmatprep.subr.mxu0 0.0
    %1450 = vmatpush1.msra.mxu0 0.0
    %1451 = vmatprep.subr.mxu0 0.0
    %1452 = vmatpush1.msra.mxu0 0.0
    %1453 = vmatprep.subr.mxu0 0.0
    %1454 = vmatpush1.msra.mxu0 0.0
    %1455 = vmatprep.subr.mxu0 0.0
    %1456 = vmatpush1.msra.mxu0 0.0
    %1457 = vmatprep.subr.mxu0 0.0
    %1458 = vmatpush1.msra.mxu0 0.0
    %1459 = vmatprep.subr.mxu0 0.0
    %1460 = vmatpush1.msra.mxu0 0.0
    %1461 = vmatprep.subr.mxu0 0.0
    %1462 = vmatpush1.msra.mxu0 0.0
    %1463 = vmatprep.subr.mxu0 0.0
    %1464 = vmatpush1.msra.mxu0 0.0
    %1465 = vmatprep.subr.mxu0 0.0
    %1466 = vmatpush1.msra.mxu0 0.0
    %1467 = vmatprep.subr.mxu0 0.0
    %1468 = vmatpush1.msra.mxu0 0.0
    %1469 = vmatprep.subr.mxu0 0.0
    %1470 = vmatpush1.msra.mxu0 0.0
    %1471 = vmatprep.subr.mxu0 0.0
    %1472 = vmatpush1.msra.mxu0 0.0
    %1473 = vmatprep.subr.mxu0 0.0
    %1474 = vmatpush1.msra.mxu0 0.0
    %1475 = vmatprep.subr.mxu0 0.0
    %1476 = vmatpush1.msra.mxu0 0.0
    %1477 = vmatprep.subr.mxu0 0.0
    %1478 = vmatpush1.msra.mxu0 0.0
    %1479 = vmatprep.mubr.f32.mxu0 0.0
    %1480 = vmatmul.mubr.f32.gmra.mrb[0].mxu0 %v1410
    %v1481 = vpop.f32.mrb[0].mxu0
    %v1482 = vadd.f32 0.0, %v1481
    %v1483 = vpop.f32.mrb[0].mxu0
    %1484 = vmatprep.mubr.f32.mxu0 0.0
    %1485 = vmatmul.mubr.f32.gmra.mrb[0].mxu0 %v1413
    %v1486 = vpop.f32.mrb[0].mxu0
    %v1487 = vadd.f32 0.0, %v1486
    %v1488 = vpop.f32.mrb[0].mxu0
    %1489 = vdwg.mxu0
    %v1490 = vld [vmem:[%s2 + $0x60] sm:$0x1]
    %vm1491 = vcmask 261120
    %v1492 = vsel %vm1491, %v1239, 0.0
    %v1493 = vsel %vm1491, %v1320, 0.0
    %v1494 = vadd.f32 %v1492, %v1493
    %v1495 = vsel %vm1491, %v1401, 0.0
    %v1496 = vadd.f32 %v1494, %v1495
    %v1497 = vsel %vm1491, %v1482, 0.0
    %v1498 = vadd.f32 %v1496, %v1497
    %v1499 = vsel %vm1491, %v1244, 0.0
    %v1500 = vsel %vm1491, %v1325, 0.0
    %v1501 = vadd.f32 %v1499, %v1500
    %v1502 = vsel %vm1491, %v1406, 0.0
    %v1503 = vadd.f32 %v1501, %v1502
    %v1504 = vsel %vm1491, %v1487, 0.0
    %v1505 = vadd.f32 %v1503, %v1504
    %v1506 = vlaneseq
    %v1507 = vshrl.u32 %v1506, 7
    %v1508 = vsub.s32 0, %v1507
    %v1509 = vrot.slane %v1490, %v1508
    %v1510 = vadd.f32 %v1498, %v1509
    %v1511 = vadd.f32 %v1505, %v1509
    %v1512 = vld [vmem:[%s2 + $0x61] sm:$0x1]
    %v1513 = vld [vmem:[%s2 + $0x62] sm:$0x1]
    %v1514 = vadd.f32 %v29, %v1510
    %v1515 = vadd.f32 %v30, %v1511
    %v1516 = vsel %vm1491, %v1514, 0.0
    %1517 = vadd.xlane.f32.xlu0 %v1516
    %v1518 = vpop.xlane.xlu0 %1517
    %v1519 = vsel %vm1491, %v1515, 0.0
    %1520 = vadd.xlane.f32.xlu0 %v1519
    %v1521 = vpop.xlane.xlu0 %1520
    %v1522 = vrcp.pop 32.0
    %v1523 = vmul.f32 %v1518, %v1522
    %v1524 = vmul.f32 %v1521, %v1522
    %v1525 = vsub.f32 %v1514, %v1523
    %v1526 = vsub.f32 %v1515, %v1524
    %v1527 = vmul.f32 %v1525, %v1525
    %v1528 = vmul.f32 %v1526, %v1526
    %v1529 = vsel %vm1491, %v1527, 0.0
    %1530 = vadd.xlane.f32.xlu0 %v1529
    %v1531 = vpop.xlane.xlu0 %1530
    %v1532 = vsel %vm1491, %v1528, 0.0
    %1533 = vadd.xlane.f32.xlu0 %v1532
    %v1534 = vpop.xlane.xlu0 %1533
    %v1535 = vmul.f32 %v1531, %v1522
    %v1536 = vmul.f32 %v1534, %v1522
    %v1537 = vadd.f32 %v1535, 1e-05
    %v1538 = vadd.f32 %v1536, 1e-05
    %v1539 = vrsqrt.pop %v1537
    %v1540 = vrsqrt.pop %v1538
    %v1541 = vmul.f32 %v1525, %v1539
    %v1542 = vmul.f32 %v1526, %v1540
    %v1543 = vlaneseq
    %v1544 = vshrl.u32 %v1543, 7
    %v1545 = vsub.s32 0, %v1544
    %v1546 = vrot.slane %v1512, %v1545
    %v1547 = vmul.f32 %v1541, %v1546
    %v1548 = vmul.f32 %v1542, %v1546
    %v1549 = vlaneseq
    %v1550 = vshrl.u32 %v1549, 7
    %v1551 = vsub.s32 0, %v1550
    %v1552 = vrot.slane %v1513, %v1551
    %v1553 = vadd.f32 %v1547, %v1552
    %v1554 = vadd.f32 %v1548, %v1552
    %v1555 = vld [vmem:[%s2] sm:$0xff]
    %v1556 = vld [vmem:[%s2 + $0x8] sm:$0xff]
    %v1557 = vld [vmem:[%s2 + $0x10] sm:$0xff]
    %v1558 = vld [vmem:[%s2 + $0x18] sm:$0xff]
    %v1559 = vld [vmem:[%s2 + $0x20] sm:$0xff]
    %v1560 = vld [vmem:[%s2 + $0x28] sm:$0xff]
    %v1561 = vld [vmem:[%s2 + $0x30] sm:$0xff]
    %v1562 = vld [vmem:[%s2 + $0x38] sm:$0xff]
    %v1563 = vld [vmem:[%s2 + $0x40] sm:$0xff]
    %v1564 = vld [vmem:[%s2 + $0x48] sm:$0xff]
    %v1565 = vld [vmem:[%s2 + $0x50] sm:$0xff]
    %v1566 = vld [vmem:[%s2 + $0x58] sm:$0xff]
    %v1567 = vld [vmem:[%s2 + $0x63] sm:$0x1]
    %v1568 = vld [vmem:[%s2 + $0x64] sm:$0x1]
    %v1569 = vlaneseq
    %v1570 = vshrl.u32 %v1569, 7
    %v1571 = vsub.s32 0, %v1570
    %v1572 = vrot.slane %v1567, %v1571
    %v1574 = vsel %vm1491, %v1553, 0
    %v1577 = vsel %vm1491, %v1554, 0
    %1579 = vmatprep.subr.mxu0 0.0
    %1580 = vmatpush1.msra.mxu0 %v1555
    %1581 = vmatprep.subr.mxu0 0.0
    %1582 = vmatpush1.msra.mxu0 %v1556
    %1583 = vmatprep.subr.mxu0 0.0
    %1584 = vmatpush1.msra.mxu0 %v1557
    %1585 = vmatprep.subr.mxu0 0.0
    %1586 = vmatpush1.msra.mxu0 %v1558
    %1587 = vmatprep.subr.mxu0 0.0
    %1588 = vmatpush1.msra.mxu0 0.0
    %1589 = vmatprep.subr.mxu0 0.0
    %1590 = vmatpush1.msra.mxu0 0.0
    %1591 = vmatprep.subr.mxu0 0.0
    %1592 = vmatpush1.msra.mxu0 0.0
    %1593 = vmatprep.subr.mxu0 0.0
    %1594 = vmatpush1.msra.mxu0 0.0
    %1595 = vmatprep.subr.mxu0 0.0
    %1596 = vmatpush1.msra.mxu0 0.0
    %1597 = vmatprep.subr.mxu0 0.0
    %1598 = vmatpush1.msra.mxu0 0.0
    %1599 = vmatprep.subr.mxu0 0.0
    %1600 = vmatpush1.msra.mxu0 0.0
    %1601 = vmatprep.subr.mxu0 0.0
    %1602 = vmatpush1.msra.mxu0 0.0
    %1603 = vmatprep.subr.mxu0 0.0
    %1604 = vmatpush1.msra.mxu0 0.0
    %1605 = vmatprep.subr.mxu0 0.0
    %1606 = vmatpush1.msra.mxu0 0.0
    %1607 = vmatprep.subr.mxu0 0.0
    %1608 = vmatpush1.msra.mxu0 0.0
    %1609 = vmatprep.subr.mxu0 0.0
    %1610 = vmatpush1.msra.mxu0 0.0
    %1611 = vmatprep.subr.mxu0 0.0
    %1612 = vmatpush1.msra.mxu0 0.0
    %1613 = vmatprep.subr.mxu0 0.0
    %1614 = vmatpush1.msra.mxu0 0.0
    %1615 = vmatprep.subr.mxu0 0.0
    %1616 = vmatpush1.msra.mxu0 0.0
    %1617 = vmatprep.subr.mxu0 0.0
    %1618 = vmatpush1.msra.mxu0 0.0
    %1619 = vmatprep.subr.mxu0 0.0
    %1620 = vmatpush1.msra.mxu0 0.0
    %1621 = vmatprep.subr.mxu0 0.0
    %1622 = vmatpush1.msra.mxu0 0.0
    %1623 = vmatprep.subr.mxu0 0.0
    %1624 = vmatpush1.msra.mxu0 0.0
    %1625 = vmatprep.subr.mxu0 0.0
    %1626 = vmatpush1.msra.mxu0 0.0
    %1627 = vmatprep.subr.mxu0 0.0
    %1628 = vmatpush1.msra.mxu0 0.0
    %1629 = vmatprep.subr.mxu0 0.0
    %1630 = vmatpush1.msra.mxu0 0.0
    %1631 = vmatprep.subr.mxu0 0.0
    %1632 = vmatpush1.msra.mxu0 0.0
    %1633 = vmatprep.subr.mxu0 0.0
    %1634 = vmatpush1.msra.mxu0 0.0
    %1635 = vmatprep.subr.mxu0 0.0
    %1636 = vmatpush1.msra.mxu0 0.0
    %1637 = vmatprep.subr.mxu0 0.0
    %1638 = vmatpush1.msra.mxu0 0.0
    %1639 = vmatprep.subr.mxu0 0.0
    %1640 = vmatpush1.msra.mxu0 0.0
    %1641 = vmatprep.subr.mxu0 0.0
    %1642 = vmatpush1.msra.mxu0 0.0
    %1643 = vmatprep.mubr.f32.mxu0 0.0
    %1644 = vmatmul.mubr.f32.gmra.mrb[0].mxu0 %v1574
    %v1645 = vpop.f32.mrb[0].mxu0
    %v1646 = vadd.f32 %v1572, %v1645
    %v1647 = vpop.f32.mrb[0].mxu0
    %1648 = vmatprep.mubr.f32.mxu0 0.0
    %1649 = vmatmul.mubr.f32.gmra.mrb[0].mxu0 %v1577
    %v1650 = vpop.f32.mrb[0].mxu0
    %v1651 = vadd.f32 %v1572, %v1650
    %v1652 = vpop.f32.mrb[0].mxu0
    %1653 = vdwg.mxu0
    %v1654 = vmax.f32 %v1646, 0.0
    %v1655 = vmax.f32 %v1651, 0.0
    %v1656 = vlaneseq
    %v1657 = vshrl.u32 %v1656, 7
    %v1658 = vsub.s32 0, %v1657
    %v1659 = vrot.slane %v1568, %v1658
    %vm1660 = vcmask 523264
    %v1662 = vsel %vm1660, %v1654, 0
    %v1665 = vsel %vm1660, %v1655, 0
    %1667 = vmatprep.subr.mxu0 0.0
    %1668 = vmatpush1.msra.mxu0 %v1559
    %1669 = vmatprep.subr.mxu0 0.0
    %1670 = vmatpush1.msra.mxu0 %v1560
    %1671 = vmatprep.subr.mxu0 0.0
    %1672 = vmatpush1.msra.mxu0 %v1561
    %1673 = vmatprep.subr.mxu0 0.0
    %1674 = vmatpush1.msra.mxu0 %v1562
    %1675 = vmatprep.subr.mxu0 0.0
    %1676 = vmatpush1.msra.mxu0 %v1563
    %1677 = vmatprep.subr.mxu0 0.0
    %1678 = vmatpush1.msra.mxu0 %v1564
    %1679 = vmatprep.subr.mxu0 0.0
    %1680 = vmatpush1.msra.mxu0 %v1565
    %1681 = vmatprep.subr.mxu0 0.0
    %1682 = vmatpush1.msra.mxu0 %v1566
    %1683 = vmatprep.subr.mxu0 0.0
    %1684 = vmatpush1.msra.mxu0 0.0
    %1685 = vmatprep.subr.mxu0 0.0
    %1686 = vmatpush1.msra.mxu0 0.0
    %1687 = vmatprep.subr.mxu0 0.0
    %1688 = vmatpush1.msra.mxu0 0.0
    %1689 = vmatprep.subr.mxu0 0.0
    %1690 = vmatpush1.msra.mxu0 0.0
    %1691 = vmatprep.subr.mxu0 0.0
    %1692 = vmatpush1.msra.mxu0 0.0
    %1693 = vmatprep.subr.mxu0 0.0
    %1694 = vmatpush1.msra.mxu0 0.0
    %1695 = vmatprep.subr.mxu0 0.0
    %1696 = vmatpush1.msra.mxu0 0.0
    %1697 = vmatprep.subr.mxu0 0.0
    %1698 = vmatpush1.msra.mxu0 0.0
    %1699 = vmatprep.subr.mxu0 0.0
    %1700 = vmatpush1.msra.mxu0 0.0
    %1701 = vmatprep.subr.mxu0 0.0
    %1702 = vmatpush1.msra.mxu0 0.0
    %1703 = vmatprep.subr.mxu0 0.0
    %1704 = vmatpush1.msra.mxu0 0.0
    %1705 = vmatprep.subr.mxu0 0.0
    %1706 = vmatpush1.msra.mxu0 0.0
    %1707 = vmatprep.subr.mxu0 0.0
    %1708 = vmatpush1.msra.mxu0 0.0
    %1709 = vmatprep.subr.mxu0 0.0
    %1710 = vmatpush1.msra.mxu0 0.0
    %1711 = vmatprep.subr.mxu0 0.0
    %1712 = vmatpush1.msra.mxu0 0.0
    %1713 = vmatprep.subr.mxu0 0.0
    %1714 = vmatpush1.msra.mxu0 0.0
    %1715 = vmatprep.subr.mxu0 0.0
    %1716 = vmatpush1.msra.mxu0 0.0
    %1717 = vmatprep.subr.mxu0 0.0
    %1718 = vmatpush1.msra.mxu0 0.0
    %1719 = vmatprep.subr.mxu0 0.0
    %1720 = vmatpush1.msra.mxu0 0.0
    %1721 = vmatprep.subr.mxu0 0.0
    %1722 = vmatpush1.msra.mxu0 0.0
    %1723 = vmatprep.subr.mxu0 0.0
    %1724 = vmatpush1.msra.mxu0 0.0
    %1725 = vmatprep.subr.mxu0 0.0
    %1726 = vmatpush1.msra.mxu0 0.0
    %1727 = vmatprep.subr.mxu0 0.0
    %1728 = vmatpush1.msra.mxu0 0.0
    %1729 = vmatprep.subr.mxu0 0.0
    %1730 = vmatpush1.msra.mxu0 0.0
    %1731 = vmatprep.mubr.f32.mxu0 0.0
    %1732 = vmatmul.mubr.f32.gmra.mrb[0].mxu0 %v1662
    %v1733 = vpop.f32.mrb[0].mxu0
    %v1734 = vadd.f32 %v1659, %v1733
    %v1735 = vpop.f32.mrb[0].mxu0
    %1736 = vmatprep.mubr.f32.mxu0 0.0
    %1737 = vmatmul.mubr.f32.gmra.mrb[0].mxu0 %v1665
    %v1738 = vpop.f32.mrb[0].mxu0
    %v1739 = vadd.f32 %v1659, %v1738
    %v1740 = vpop.f32.mrb[0].mxu0
    %1741 = vdwg.mxu0
    %v1742 = vld [vmem:[%s2 + $0x65] sm:$0x1]
    %v1743 = vld [vmem:[%s2 + $0x66] sm:$0x1]
    %v1744 = vadd.f32 %v1553, %v1734
    %v1745 = vadd.f32 %v1554, %v1739
    %v1746 = vsel %vm1491, %v1744, 0.0
    %1747 = vadd.xlane.f32.xlu0 %v1746
    %v1748 = vpop.xlane.xlu0 %1747
    %v1749 = vsel %vm1491, %v1745, 0.0
    %1750 = vadd.xlane.f32.xlu0 %v1749
    %v1751 = vpop.xlane.xlu0 %1750
    %v1752 = vmul.f32 %v1748, %v1522
    %v1753 = vmul.f32 %v1751, %v1522
    %v1754 = vsub.f32 %v1744, %v1752
    %v1755 = vsub.f32 %v1745, %v1753
    %v1756 = vmul.f32 %v1754, %v1754
    %v1757 = vmul.f32 %v1755, %v1755
    %v1758 = vsel %vm1491, %v1756, 0.0
    %1759 = vadd.xlane.f32.xlu0 %v1758
    %v1760 = vpop.xlane.xlu0 %1759
    %v1761 = vsel %vm1491, %v1757, 0.0
    %1762 = vadd.xlane.f32.xlu0 %v1761
    %v1763 = vpop.xlane.xlu0 %1762
    %v1764 = vmul.f32 %v1760, %v1522
    %v1765 = vmul.f32 %v1763, %v1522
    %v1766 = vadd.f32 %v1764, 1e-05
    %v1767 = vadd.f32 %v1765, 1e-05
    %v1768 = vrsqrt.pop %v1766
    %v1769 = vrsqrt.pop %v1767
    %v1770 = vmul.f32 %v1754, %v1768
    %v1771 = vmul.f32 %v1755, %v1769
    %v1772 = vlaneseq
    %v1773 = vshrl.u32 %v1772, 7
    %v1774 = vsub.s32 0, %v1773
    %v1775 = vrot.slane %v1742, %v1774
    %v1776 = vmul.f32 %v1770, %v1775
    %v1777 = vmul.f32 %v1771, %v1775
    %v1778 = vlaneseq
    %v1779 = vshrl.u32 %v1778, 7
    %v1780 = vsub.s32 0, %v1779
    %v1781 = vrot.slane %v1743, %v1780
    %v1782 = vadd.f32 %v1776, %v1781
    %v1783 = vadd.f32 %v1777, %v1781
    %1784 = vst.msk [vmem:[#allocation5] sm:$0xff] %vm1491, %v1782
    %1785 = vst.msk [vmem:[#allocation5 + $0x8] sm:$0xff] %vm1491, %v1783
    // Predicated region
    $region18: #{transformer_encoder_layer.1} parent=1 // pred_check
      _
    $region19: #{transformer_encoder_layer.1} parent=1 // pred_check_branch
      %1787 = sbr.rel (0) target = $region21
    $region20: #{transformer_encoder_layer.1} parent=1 // pred_region
      %s1789 = ssub.s32 256, 256
      %1790 = vsyncadd [#allocation4], %s1789
      %s1791 = sshll.u32 [#allocation5], 4
      %s1792 = int_to_ptr.vmem [resolvable:$true] %s1791
      %1797 = dma.vmem_to_hbm [thread:$0]  %s1792, 256, %s3, [#allocation4], 128, 128, 8
    $region21: #{transformer_encoder_layer.1} parent=1 // pred_fallthru
      _
    // Predicated region
    $region22: #{transformer_encoder_layer.1} parent=1 // pred_check
      _
    $region23: #{transformer_encoder_layer.1} parent=1 // pred_check_branch
      %1799 = sbr.rel (0) target = $region25
    $region24: #{transformer_encoder_layer.1} parent=1 // pred_region
      %1800 = dma.done [#allocation4], 256
    $region25: #{transformer_encoder_layer.1} parent=1 // pred_fallthru
      _
    %1801 = vsyncpa [#allocation3], 1
    %1802 = vsyncpa [#allocation4], 1

</llo_original>
